<compile_context>
chip_gen: v5e
topology: v5e:2x2
jax: 0.10.0
libtpu: 0.0.40
codegen_flags: <defaults>
</compile_context>

<pallas_src>
import functools

import jax
import jax.numpy as jnp
import numpy as np
from jax.experimental import pallas as pl
from jax.experimental.pallas import tpu as pltpu


# ---------------------------------------------------------------------------
# helpers
# ---------------------------------------------------------------------------
def _round_up(x, m):
    return (x + m - 1) // m * m


def _pad2d(x, rows, cols):
    """Zero-pad a 2-D array to (rows, cols). Padding is exact for this model."""
    out = jnp.zeros((rows, cols), x.dtype)
    return out.at[: x.shape[0], : x.shape[1]].set(x)


def _bf16r(x):
    """Round to bf16 and back (used only by the mirrored references)."""
    return x.astype(jnp.bfloat16).astype(jnp.float32)


def _vmem_capacity_bytes(default=64 * 1024 * 1024):
    """Per-core VMEM capacity; conservative default (v7x) if the query is unavailable."""
    try:
        return int(pltpu.get_tpu_info().vmem_capacity_bytes)
    except Exception:
        return default


def build_adjacency(edge_index, n_src, n_dst):
    """edge_index: (2, E) [src; dst] -> un-normalised counts (n_dst, n_src) + 1/deg column.

    The mean normalisation is applied inside the kernels *after* aggregation, so the
    adjacency can be stored exactly in int8 / bf16 (review: 8-bit A stream + finalize scale).
    """
    # TODO(synk): for very large sparse graphs replace the dense counts matrix with a
    # scalar-prefetch / DMA-gather segment-mean aggregation inside the kernel.
    src, dst = edge_index[0], edge_index[1]
    counts = jnp.zeros((n_dst, n_src), jnp.float32).at[dst, src].add(1.0)
    deg_inv = 1.0 / jnp.clip(counts.sum(axis=1, keepdims=True), 1.0, None)
    return counts, deg_inv


# ---------------------------------------------------------------------------
# Kernel 1: fully fused forward (graphs that fit VMEM -> single launch)
# ---------------------------------------------------------------------------
def _fused_forward_kernel(
    a_u2r_ref, a_r2u_ref, dinv_r_ref, dinv_u_ref, xu_ref, xr_ref,
    w1url_ref, w1urr_ref, b1ur_ref,
    w1rul_ref, w1rur_ref, b1ru_ref,
    w2url_ref, w2urr_ref, b2ur_ref,
    w2rul_ref, w2rur_ref, b2ru_ref,
    wdu_ref, bdu_ref, wdr_ref, bdr_ref,
    pu_ref, pr_ref, o_ref, *, cdt,
):
    dot = functools.partial(jnp.dot, preferred_element_type=jnp.float32)
    cast = lambda v: v.astype(cdt)  # bf16 MXU inputs (f32 accumulation) in bf16 mode

    a_u2r = a_u2r_ref[...]          # (N_rest, N_user) un-normalised counts
    a_r2u = a_r2u_ref[...]          # (N_user, N_rest)
    xu = xu_ref[...]
    xr = xr_ref[...]

    # ---- layer 1 SAGEConv per edge type: counts @ (x_src @ W_l), then exact 1/deg scale ----
    xw = cast(dot(xu, w1url_ref[...]))
    h_rest = dinv_r_ref[...] * dot(a_u2r, xw) + dot(xr, w1urr_ref[...]) + b1ur_ref[...]
    h_rest = jnp.maximum(h_rest, 0.0)
    xw = cast(dot(xr, w1rul_ref[...]))
    h_user = dinv_u_ref[...] * dot(a_r2u, xw) + dot(xu, w1rur_ref[...]) + b1ru_ref[...]
    h_user = jnp.maximum(h_user, 0.0)

    # ---- layer 2 ----
    h_rest_c = cast(h_rest)
    h_user_c = cast(h_user)
    xw = cast(dot(h_user_c, w2url_ref[...]))
    z_rest = dinv_r_ref[...] * dot(a_u2r, xw) + dot(h_rest_c, w2urr_ref[...]) + b2ur_ref[...]
    xw = cast(dot(h_rest_c, w2rul_ref[...]))
    z_user = dinv_u_ref[...] * dot(a_r2u, xw) + dot(h_user_c, w2rur_ref[...]) + b2ru_ref[...]

    # ---- edge decoder: endpoint gather stays on the MXU via one-hot selection matmuls ----
    u_emb = dot(pu_ref[...], cast(z_user))           # (E_pad, HP)
    r_emb = dot(pr_ref[...], cast(z_rest))
    uh = dot(cast(u_emb), wdu_ref[...]) + bdu_ref[...]
    rh = dot(cast(r_emb), wdr_ref[...]) + bdr_ref[...]
    prod = uh * rh                                   # (E_pad, HP) f32
    # lane-dense (1, E_pad) score row: reduce over HP via a matmul against ones.
    ones8 = jnp.ones((8, prod.shape[-1]), jnp.float32)
    o_ref[...] = dot(ones8, prod.T)[0:1, :]


def fused_forward(params_p, x_user, x_rest, counts_u2r, counts_r2u, dinv_r, dinv_u,
                  edge_label_index, *, use_bf16=False):
    """Single-launch forward. All operands (HP-padded weights) live in VMEM."""
    n_e = int(edge_label_index.shape[1])
    e_pad = _round_up(max(n_e, 1), 128)
    n_u, n_r = x_user.shape[0], x_rest.shape[0]
    cdt = jnp.bfloat16 if use_bf16 else jnp.float32

    # One-hot endpoint selection matrices (0/1 values -> exact in any dtype).
    # NOTE: padded label rows produce b_u*b_r scores; they are sliced off below.
    p_u = jnp.zeros((e_pad, n_u), cdt).at[jnp.arange(n_e), edge_label_index[0]].set(1.0)
    p_r = jnp.zeros((e_pad, n_r), cdt).at[jnp.arange(n_e), edge_label_index[1]].set(1.0)

    enc = lambda k: params_p[k].astype(cdt)          # encoder / decoder weights -> MXU dtype
    f32 = lambda k: params_p[k]                      # biases stay f32
    args = (counts_u2r.astype(cdt), counts_r2u.astype(cdt), dinv_r, dinv_u,
            x_user.astype(cdt), x_rest.astype(cdt),
            enc("l1_u2r_wl"), enc("l1_u2r_wr"), f32("l1_u2r_b"),
            enc("l1_r2u_wl"), enc("l1_r2u_wr"), f32("l1_r2u_b"),
            enc("l2_u2r_wl"), enc("l2_u2r_wr"), f32("l2_u2r_b"),
            enc("l2_r2u_wl"), enc("l2_r2u_wr"), f32("l2_r2u_b"),
            enc("dec_u_w"), f32("dec_u_b"), enc("dec_r_w"), f32("dec_r_b"),
            p_u, p_r)
    in_specs = [pl.BlockSpec(a.shape, lambda i, _nd=a.ndim: (0,) * _nd) for a in args]

    in_bytes = sum(int(np.prod(a.shape)) * a.dtype.itemsize for a in args)
    vmem_limit = max(32 * 1024 * 1024,
                     min(3 * in_bytes + 32 * 1024 * 1024,
                         int(0.8 * _vmem_capacity_bytes())))

    out = pl.pallas_call(
        functools.partial(_fused_forward_kernel, cdt=cdt),
        out_shape=jax.ShapeDtypeStruct((1, e_pad), jnp.float32),
        grid=(1,),
        in_specs=in_specs,
        out_specs=pl.BlockSpec((1, e_pad), lambda i: (0, 0)),
        compiler_params=pltpu.CompilerParams(
            dimension_semantics=("arbitrary",),
            vmem_limit_bytes=vmem_limit),
    )(*args)
    return out[0, :n_e]


def fused_vmem_estimate(n_user, n_rest, feat_user, feat_rest, n_edges, hp, use_bf16=True):
    """Rough VMEM footprint of the fused launch (double-buffered inputs + temporaries)."""
    cb = 2 if use_bf16 else 4
    e_pad = _round_up(max(n_edges, 1), 128)
    inputs = (2 * n_user * n_rest * cb
              + e_pad * (n_user + n_rest) * cb
              + (n_user * feat_user + n_rest * feat_rest) * cb
              + (n_user + n_rest + 2) * 4
              + ((feat_user + feat_rest) * hp * 2 + 6 * hp * hp) * cb
              + 6 * hp * 4)
    temporaries = 6 * (n_user + n_rest) * hp * 4 + 6 * e_pad * hp * 4
    return 2 * inputs + temporaries


# ---------------------------------------------------------------------------
# Kernel 2a: row-tiled matmul (hoisted neighbour projection XW = x_src @ W_l)
# ---------------------------------------------------------------------------
def _matmul_rows_kernel(x_ref, w_ref, o_ref):
    o_ref[...] = jnp.dot(x_ref[...], w_ref[...], preferred_element_type=jnp.float32)


def matmul_rows(x, w, *, tile_m=512):
    m, kdim = x.shape
    h = w.shape[1]
    tile_m = min(tile_m, _round_up(m, 8))
    mp = _round_up(m, tile_m)
    x_p = _pad2d(x, mp, kdim)
    out = pl.pallas_call(
        _matmul_rows_kernel,
        out_shape=jax.ShapeDtypeStruct((mp, h), jnp.float32),
        grid=(mp // tile_m,),
        in_specs=[pl.BlockSpec((tile_m, kdim), lambda i: (i, 0)),
                  pl.BlockSpec((kdim, h), lambda i: (0, 0))],
        out_specs=pl.BlockSpec((tile_m, h), lambda i: (i, 0)),
        compiler_params=pltpu.CompilerParams(
            dimension_semantics=("parallel",),
            vmem_limit_bytes=32 * 1024 * 1024),
    )(x_p, w)
    return out[:m]


# ---------------------------------------------------------------------------
# Kernel 2b: tiled SAGE aggregation (int8 adjacency stream, deg-inv finalize)
# ---------------------------------------------------------------------------
def _sage_agg_kernel(a_ref, xw_ref, xd_ref, wr_ref, b_ref, dinv_ref, o_ref, *, relu, cdt):
    k = pl.program_id(1)

    # init: accumulate directly into the resident f32 output block (no scratch).
    @pl.when(k == 0)
    def _():
        o_ref[...] = jnp.zeros_like(o_ref)

    # adjacency counts arrive as int8; widen to the MXU compute dtype (small integers,
    # exact in bf16).  Inner step is a single clean A_tile @ XW_tile.
    a = a_ref[...].astype(jnp.float32).astype(cdt)
    o_ref[...] += jnp.dot(a, xw_ref[...], preferred_element_type=jnp.float32)

    # finalize: exact mean scaling (1/deg) + root term x_dst @ W_r + b (+ReLU).
    @pl.when(k == pl.num_programs(1) - 1)
    def _():
        root = jnp.dot(xd_ref[...], wr_ref[...], preferred_element_type=jnp.float32) + b_ref[...]
        out = dinv_ref[...] * o_ref[...] + root
        if relu:
            out = jnp.maximum(out, 0.0)
        o_ref[...] = out


def sage_conv_tiled(counts, deg_inv, x_src, x_dst, w_l, w_r, b, *, relu,
                    tile_dst=512, tile_src=None, use_bf16=True):
    """out = mean_aggr(A @ x_src) @ W_l + x_dst @ W_r + b   [optional ReLU]

    * XW = x_src @ W_l is hoisted into a single row-tiled pre-pass (not per dst tile).
    * A is streamed as un-normalised int8 counts; 1/deg is applied at finalize (exact).
    * Default tile_src=None means "full source extent" -> the reduction axis collapses.
    * Keep the dst ("parallel") grid extent >= 2 so v7x megacore sharding stays busy.
    # TODO(synk): if the A-tile DMA is still exposed on huge graphs, add
    # pipeline_mode=pl.Buffered(3) to the adjacency BlockSpec.
    """
    n_dst, n_src = counts.shape
    f_dst = x_dst.shape[1]
    h = w_l.shape[1]
    cdt = jnp.bfloat16 if use_bf16 else jnp.float32

    # hoisted neighbour projection (computed once per conv).
    xw = matmul_rows(x_src.astype(cdt), w_l.astype(cdt)).astype(cdt)

    tile_dst = min(tile_dst, _round_up(n_dst, 128))
    md = _round_up(n_dst, tile_dst)
    full_src = _round_up(n_src, 128)
    tile_src = full_src if tile_src is None else min(_round_up(tile_src, 128), full_src)
    ks = _round_up(n_src, tile_src)

    a_p = _pad2d(counts, md, ks).astype(jnp.int8)     # exact small-integer counts
    xw_p = _pad2d(xw, ks, h)
    xd_p = _pad2d(x_dst.astype(cdt), md, f_dst)
    dinv_p = jnp.ones((md, 1), jnp.float32).at[:n_dst, :].set(deg_inv)

    grid = (md // tile_dst, ks // tile_src)
    kernel = functools.partial(_sage_agg_kernel, relu=relu, cdt=cdt)
    out = pl.pallas_call(
        kernel,
        out_shape=jax.ShapeDtypeStruct((md, h), jnp.float32),
        grid=grid,
        in_specs=[
            pl.BlockSpec((tile_dst, tile_src), lambda i, k: (i, k)),
            pl.BlockSpec((tile_src, h), lambda i, k: (k, 0)),
            pl.BlockSpec((tile_dst, f_dst), lambda i, k: (i, 0)),
            pl.BlockSpec((f_dst, h), lambda i, k: (0, 0)),
            pl.BlockSpec((1, h), lambda i, k: (0, 0)),
            pl.BlockSpec((tile_dst, 1), lambda i, k: (i, 0)),
        ],
        out_specs=pl.BlockSpec((tile_dst, h), lambda i, k: (i, 0)),
        compiler_params=pltpu.CompilerParams(
            dimension_semantics=("parallel", "arbitrary"),
            vmem_limit_bytes=48 * 1024 * 1024),
    )(a_p, xw_p, xd_p, w_r.astype(cdt), b, dinv_p)
    return out[:n_dst]


# ---------------------------------------------------------------------------
# Kernel 3: edge decoder on gathered endpoint embeddings (lane-dense output)
# ---------------------------------------------------------------------------
def _edge_decoder_kernel(u_ref, r_ref, wu_ref, bu_ref, wr_ref, br_ref, o_ref):
    dot = functools.partial(jnp.dot, preferred_element_type=jnp.float32)
    uh = dot(u_ref[...], wu_ref[...]) + bu_ref[...]
    rh = dot(r_ref[...], wr_ref[...]) + br_ref[...]
    prod = uh * rh                                   # (TILE_E, HP) f32
    ones8 = jnp.ones((8, prod.shape[-1]), jnp.float32)
    o_ref[...] = dot(ones8, prod.T)[0:1, :]          # lane-dense (1, TILE_E) store


def edge_decoder(z_user, z_rest, edge_label_index, w_u, b_u, w_r, b_r,
                 *, use_bf16=True, tile_e=512):
    n_e = int(edge_label_index.shape[1])
    h = z_user.shape[1]
    tile_e = min(tile_e, _round_up(max(n_e, 1), 128))
    e_pad = _round_up(max(n_e, 1), tile_e)
    cdt = jnp.bfloat16 if use_bf16 else jnp.float32

    # wrapper-side endpoint row gather (replaces the O(E*N) one-hot matmuls).
    # NOTE: padded rows are all-zero embeddings -> b_u*b_r scores, sliced off below.
    u_emb = _pad2d(jnp.take(z_user, edge_label_index[0], axis=0).astype(cdt), e_pad, h)
    r_emb = _pad2d(jnp.take(z_rest, edge_label_index[1], axis=0).astype(cdt), e_pad, h)

    out = pl.pallas_call(
        _edge_decoder_kernel,
        out_shape=jax.ShapeDtypeStruct((1, e_pad), jnp.float32),
        grid=(e_pad // tile_e,),
        in_specs=[
            pl.BlockSpec((tile_e, h), lambda e: (e, 0)),
            pl.BlockSpec((tile_e, h), lambda e: (e, 0)),
            pl.BlockSpec((h, h), lambda e: (0, 0)),
            pl.BlockSpec((1, h), lambda e: (0, 0)),
            pl.BlockSpec((h, h), lambda e: (0, 0)),
            pl.BlockSpec((1, h), lambda e: (0, 0)),
        ],
        out_specs=pl.BlockSpec((1, tile_e), lambda e: (0, e)),
        compiler_params=pltpu.CompilerParams(
            dimension_semantics=("parallel",),
            vmem_limit_bytes=32 * 1024 * 1024),
    )(u_emb, r_emb, w_u.astype(cdt), b_u, w_r.astype(cdt), b_r)
    return out[0, :n_e]


# ---------------------------------------------------------------------------
# Model glue (plain JAX): params, padding, forwards
# ---------------------------------------------------------------------------
def init_linear(key, fan_in, fan_out, bias=True):
    kw, kb = jax.random.split(key)
    bound = 1.0 / np.sqrt(fan_in)
    w = jax.random.uniform(kw, (fan_in, fan_out), jnp.float32, -bound, bound)
    if not bias:
        return w, None
    b = jax.random.uniform(kb, (1, fan_out), jnp.float32, -bound, bound)
    return w, b


def init_params(key, feat_user, feat_rest, hidden):
    keys = jax.random.split(key, 12)
    p = {}
    p["l1_u2r_wl"], p["l1_u2r_b"] = init_linear(keys[0], feat_user, hidden)
    p["l1_u2r_wr"], _ = init_linear(keys[1], feat_rest, hidden, bias=False)
    p["l1_r2u_wl"], p["l1_r2u_b"] = init_linear(keys[2], feat_rest, hidden)
    p["l1_r2u_wr"], _ = init_linear(keys[3], feat_user, hidden, bias=False)
    p["l2_u2r_wl"], p["l2_u2r_b"] = init_linear(keys[4], hidden, hidden)
    p["l2_u2r_wr"], _ = init_linear(keys[5], hidden, hidden, bias=False)
    p["l2_r2u_wl"], p["l2_r2u_b"] = init_linear(keys[6], hidden, hidden)
    p["l2_r2u_wr"], _ = init_linear(keys[7], hidden, hidden, bias=False)
    p["dec_u_w"], p["dec_u_b"] = init_linear(keys[8], hidden, hidden)
    p["dec_r_w"], p["dec_r_b"] = init_linear(keys[9], hidden, hidden)
    return p


def pad_params(p, hp):
    """Zero-pad the hidden width to hp (multiple of 128) -> lane-dense kernels, exact math."""
    q = {}
    for k in ["l1_u2r_wl", "l1_u2r_wr", "l1_r2u_wl", "l1_r2u_wr"]:
        q[k] = _pad2d(p[k], p[k].shape[0], hp)                   # raw feature input dim kept
    for k in ["l2_u2r_wl", "l2_u2r_wr", "l2_r2u_wl", "l2_r2u_wr", "dec_u_w", "dec_r_w"]:
        q[k] = _pad2d(p[k], hp, hp)                              # padded activations in & out
    for k in ["l1_u2r_b", "l1_r2u_b", "l2_u2r_b", "l2_r2u_b", "dec_u_b", "dec_r_b"]:
        q[k] = _pad2d(p[k], 1, hp)
    return q


def baseline_forward_fused(params_p, x_user, x_rest, edge_u2r, edge_r2u, edge_label_index,
                           *, use_bf16=False):
    n_u, n_r = x_user.shape[0], x_rest.shape[0]
    c_u2r, dinv_u2r = build_adjacency(edge_u2r, n_u, n_r)
    c_r2u, dinv_r2u = build_adjacency(edge_r2u, n_r, n_u)
    return fused_forward(params_p, x_user, x_rest, c_u2r, c_r2u, dinv_u2r, dinv_r2u,
                         edge_label_index, use_bf16=use_bf16)


def baseline_forward_tiled(params_p, x_user, x_rest, edge_u2r, edge_r2u, edge_label_index,
                           *, tile_dst=512, tile_src=None, use_bf16=True):
    n_u, n_r = x_user.shape[0], x_rest.shape[0]
    c_u2r, dinv_u2r = build_adjacency(edge_u2r, n_u, n_r)
    c_r2u, dinv_r2u = build_adjacency(edge_r2u, n_r, n_u)
    conv = functools.partial(sage_conv_tiled, tile_dst=tile_dst, tile_src=tile_src,
                             use_bf16=use_bf16)
    h_rest = conv(c_u2r, dinv_u2r, x_user, x_rest, params_p["l1_u2r_wl"],
                  params_p["l1_u2r_wr"], params_p["l1_u2r_b"], relu=True)
    h_user = conv(c_r2u, dinv_r2u, x_rest, x_user, params_p["l1_r2u_wl"],
                  params_p["l1_r2u_wr"], params_p["l1_r2u_b"], relu=True)
    z_rest = conv(c_u2r, dinv_u2r, h_user, h_rest, params_p["l2_u2r_wl"],
                  params_p["l2_u2r_wr"], params_p["l2_u2r_b"], relu=False)
    z_user = conv(c_r2u, dinv_r2u, h_rest, h_user, params_p["l2_r2u_wl"],
                  params_p["l2_r2u_wr"], params_p["l2_r2u_b"], relu=False)
    return edge_decoder(z_user, z_rest, edge_label_index,
                        params_p["dec_u_w"], params_p["dec_u_b"],
                        params_p["dec_r_w"], params_p["dec_r_b"], use_bf16=use_bf16)


# ---------------------------------------------------------------------------
# Pure-JAX references (f32 ground truth, and a bf16-mirrored variant)
# ---------------------------------------------------------------------------
def _conv_reference(counts, dinv, xs, xd, wl, wr, b, *, relu, bf16):
    if bf16:
        xw = _bf16r(_bf16r(xs) @ _bf16r(wl))
        agg = (counts @ xw) * dinv
        root = _bf16r(xd) @ _bf16r(wr)
    else:
        agg = (counts @ (xs @ wl)) * dinv
        root = xd @ wr
    out = agg + root + b
    return jnp.maximum(out, 0.0) if relu else out


def reference_forward(params, x_user, x_rest, edge_u2r, edge_r2u, edge_label_index,
                      *, bf16=False):
    n_u, n_r = x_user.shape[0], x_rest.shape[0]
    c_u2r, dinv_u2r = build_adjacency(edge_u2r, n_u, n_r)
    c_r2u, dinv_r2u = build_adjacency(edge_r2u, n_r, n_u)
    conv = functools.partial(_conv_reference, bf16=bf16)
    h_r = conv(c_u2r, dinv_u2r, x_user, x_rest, params["l1_u2r_wl"], params["l1_u2r_wr"],
               params["l1_u2r_b"], relu=True)
    h_u = conv(c_r2u, dinv_r2u, x_rest, x_user, params["l1_r2u_wl"], params["l1_r2u_wr"],
               params["l1_r2u_b"], relu=True)
    z_r = conv(c_u2r, dinv_u2r, h_u, h_r, params["l2_u2r_wl"], params["l2_u2r_wr"],
               params["l2_u2r_b"], relu=False)
    z_u = conv(c_r2u, dinv_r2u, h_r, h_u, params["l2_r2u_wl"], params["l2_r2u_wr"],
               params["l2_r2u_b"], relu=False)
    u_emb = z_u[edge_label_index[0]]
    r_emb = z_r[edge_label_index[1]]
    if bf16:
        u_emb, r_emb = _bf16r(u_emb), _bf16r(r_emb)
        wdu, wdr = _bf16r(params["dec_u_w"]), _bf16r(params["dec_r_w"])
    else:
        wdu, wdr = params["dec_u_w"], params["dec_r_w"]
    u = u_emb @ wdu + params["dec_u_b"]
    r = r_emb @ wdr + params["dec_r_b"]
    return (u * r).sum(-1)


# ---------------------------------------------------------------------------
# main
# ---------------------------------------------------------------------------
if __name__ == "__main__":
    hidden = 32
    hp = _round_up(hidden, 128)     # lane-dense hidden width inside the kernels

    key = jax.random.PRNGKey(0)
    k_xu, k_xr, k_e1, k_e2, k_lab, k_p, k_big = jax.random.split(key, 7)

    # ---------- small graph: single fused kernel, f32 (exact check) ----------
    n_user, n_rest = 8, 16
    feat_user = feat_rest = 32
    n_edges, n_label = 24, 10

    x_user = jax.random.normal(k_xu, (n_user, feat_user), jnp.float32)
    x_rest = jax.random.normal(k_xr, (n_rest, feat_rest), jnp.float32)
    e_u = jax.random.randint(k_e1, (n_edges,), 0, n_user)
    e_r = jax.random.randint(k_e2, (n_edges,), 0, n_rest)
    edge_u2r = jnp.stack([e_u, e_r])      # ('user','rates','restaurant')
    edge_r2u = jnp.stack([e_r, e_u])      # reverse edge type
    lab_u = jax.random.randint(k_lab, (n_label,), 0, n_user)
    lab_r = jax.random.randint(jax.random.fold_in(k_lab, 1), (n_label,), 0, n_rest)
    edge_label_index = jnp.stack([lab_u, lab_r])

    params = init_params(k_p, feat_user, feat_rest, hidden)
    params_p = pad_params(params, hp)

    scores = baseline_forward_fused(params_p, x_user, x_rest, edge_u2r, edge_r2u,
                                    edge_label_index, use_bf16=False)
    scores = jax.block_until_ready(scores)
    ref = reference_forward(params, x_user, x_rest, edge_u2r, edge_r2u, edge_label_index,
                            bf16=False)
    if not np.allclose(np.asarray(scores), np.asarray(ref), atol=1e-3, rtol=1e-3):
        raise AssertionError("fused (f32) Pallas forward mismatch vs f32 reference")

    # ---------- larger graph ----------
    N_USER, N_REST, FEAT = 1024, 1536, 32
    N_EDGES, N_LABEL = 8192, 600
    kb = jax.random.split(k_big, 7)
    xu2 = jax.random.normal(kb[0], (N_USER, FEAT), jnp.float32)
    xr2 = jax.random.normal(kb[1], (N_REST, FEAT), jnp.float32)
    eu2 = jax.random.randint(kb[2], (N_EDGES,), 0, N_USER)
    er2 = jax.random.randint(kb[3], (N_EDGES,), 0, N_REST)
    edge_u2r_2 = jnp.stack([eu2, er2])
    edge_r2u_2 = jnp.stack([er2, eu2])
    lu2 = jax.random.randint(kb[4], (N_LABEL,), 0, N_USER)
    lr2 = jax.random.randint(kb[5], (N_LABEL,), 0, N_REST)
    edge_label_index_2 = jnp.stack([lu2, lr2])

    params2 = init_params(kb[6], FEAT, FEAT, hidden)
    params2_p = pad_params(params2, hp)

    ref2 = reference_forward(params2, xu2, xr2, edge_u2r_2, edge_r2u_2, edge_label_index_2,
                             bf16=True)

    # (a) tiled path: int8 adjacency stream + exact deg-inv finalize, hoisted XW pre-pass,
    #     bf16 MXU inputs (f32 accumulation), wrapper-side index gather for the decoder.
    scores_t = baseline_forward_tiled(params2_p, xu2, xr2, edge_u2r_2, edge_r2u_2,
                                      edge_label_index_2, tile_dst=512, use_bf16=True)
    scores_t = jax.block_until_ready(scores_t)
    if not np.allclose(np.asarray(scores_t), np.asarray(ref2), atol=3e-2, rtol=3e-2):
        raise AssertionError("tiled Pallas forward mismatch vs bf16-mirrored reference")

    # (b) the same graph through ONE fused launch when it fits the per-core VMEM budget
    #     (v5e/v6e: 128 MiB -> yes; v7x: 64 MiB -> conservatively falls back to (a)).
    est = fused_vmem_estimate(N_USER, N_REST, FEAT, FEAT, N_LABEL, hp, use_bf16=True)
    if est <= 0.45 * _vmem_capacity_bytes():
        scores_f = baseline_forward_fused(params2_p, xu2, xr2, edge_u2r_2, edge_r2u_2,
                                          edge_label_index_2, use_bf16=True)
        scores_f = jax.block_until_ready(scores_f)
        if not np.allclose(np.asarray(scores_f), np.asarray(ref2), atol=3e-2, rtol=3e-2):
            raise AssertionError("fused (bf16) Pallas forward mismatch vs bf16-mirrored reference")

    print("KERNEL_OK")
</pallas_src>

<mosaic_0001>
module attributes {stable_mosaic.version = 11 : i64} {
  func.func @_fused_forward_kernel(%arg0: i32, %arg1: memref<16x8xf32, #tpu.memory_space<vmem>>, %arg2: memref<8x16xf32, #tpu.memory_space<vmem>>, %arg3: memref<16x1xf32, #tpu.memory_space<vmem>>, %arg4: memref<8x1xf32, #tpu.memory_space<vmem>>, %arg5: memref<8x32xf32, #tpu.memory_space<vmem>>, %arg6: memref<16x32xf32, #tpu.memory_space<vmem>>, %arg7: memref<32x128xf32, #tpu.memory_space<vmem>>, %arg8: memref<32x128xf32, #tpu.memory_space<vmem>>, %arg9: memref<1x128xf32, #tpu.memory_space<vmem>>, %arg10: memref<32x128xf32, #tpu.memory_space<vmem>>, %arg11: memref<32x128xf32, #tpu.memory_space<vmem>>, %arg12: memref<1x128xf32, #tpu.memory_space<vmem>>, %arg13: memref<128x128xf32, #tpu.memory_space<vmem>>, %arg14: memref<128x128xf32, #tpu.memory_space<vmem>>, %arg15: memref<1x128xf32, #tpu.memory_space<vmem>>, %arg16: memref<128x128xf32, #tpu.memory_space<vmem>>, %arg17: memref<128x128xf32, #tpu.memory_space<vmem>>, %arg18: memref<1x128xf32, #tpu.memory_space<vmem>>, %arg19: memref<128x128xf32, #tpu.memory_space<vmem>>, %arg20: memref<1x128xf32, #tpu.memory_space<vmem>>, %arg21: memref<128x128xf32, #tpu.memory_space<vmem>>, %arg22: memref<1x128xf32, #tpu.memory_space<vmem>>, %arg23: memref<128x8xf32, #tpu.memory_space<vmem>>, %arg24: memref<128x16xf32, #tpu.memory_space<vmem>>, %arg25: memref<1x128xf32, #tpu.memory_space<vmem>>) attributes {dimension_semantics = [#tpu.dimension_semantics<arbitrary>], iteration_bounds = array<i64: 1>, scalar_prefetch = 0 : i64, scratch_operands = 0 : i64, tpu.core_type = #tpu.core_type<tc>, window_params = [{pipeline_mode = #tpu.pipeline_mode<synchronous>, transform_indices = @transform_0, window_bounds = array<i64: 16, 8>}, {pipeline_mode = #tpu.pipeline_mode<synchronous>, transform_indices = @transform_1, window_bounds = array<i64: 8, 16>}, {pipeline_mode = #tpu.pipeline_mode<synchronous>, transform_indices = @transform_2, window_bounds = array<i64: 16, 1>}, {pipeline_mode = #tpu.pipeline_mode<synchronous>, transform_indices = @transform_3, window_bounds = array<i64: 8, 1>}, {pipeline_mode = #tpu.pipeline_mode<synchronous>, transform_indices = @transform_4, window_bounds = array<i64: 8, 32>}, {pipeline_mode = #tpu.pipeline_mode<synchronous>, transform_indices = @transform_5, window_bounds = array<i64: 16, 32>}, {pipeline_mode = #tpu.pipeline_mode<synchronous>, transform_indices = @transform_6, window_bounds = array<i64: 32, 128>}, {pipeline_mode = #tpu.pipeline_mode<synchronous>, transform_indices = @transform_7, window_bounds = array<i64: 32, 128>}, {pipeline_mode = #tpu.pipeline_mode<synchronous>, transform_indices = @transform_8, window_bounds = array<i64: 1, 128>}, {pipeline_mode = #tpu.pipeline_mode<synchronous>, transform_indices = @transform_9, window_bounds = array<i64: 32, 128>}, {pipeline_mode = #tpu.pipeline_mode<synchronous>, transform_indices = @transform_10, window_bounds = array<i64: 32, 128>}, {pipeline_mode = #tpu.pipeline_mode<synchronous>, transform_indices = @transform_11, window_bounds = array<i64: 1, 128>}, {pipeline_mode = #tpu.pipeline_mode<synchronous>, transform_indices = @transform_12, window_bounds = array<i64: 128, 128>}, {pipeline_mode = #tpu.pipeline_mode<synchronous>, transform_indices = @transform_13, window_bounds = array<i64: 128, 128>}, {pipeline_mode = #tpu.pipeline_mode<synchronous>, transform_indices = @transform_14, window_bounds = array<i64: 1, 128>}, {pipeline_mode = #tpu.pipeline_mode<synchronous>, transform_indices = @transform_15, window_bounds = array<i64: 128, 128>}, {pipeline_mode = #tpu.pipeline_mode<synchronous>, transform_indices = @transform_16, window_bounds = array<i64: 128, 128>}, {pipeline_mode = #tpu.pipeline_mode<synchronous>, transform_indices = @transform_17, window_bounds = array<i64: 1, 128>}, {pipeline_mode = #tpu.pipeline_mode<synchronous>, transform_indices = @transform_18, window_bounds = array<i64: 128, 128>}, {pipeline_mode = #tpu.pipeline_mode<synchronous>, transform_indices = @transform_19, window_bounds = array<i64: 1, 128>}, {pipeline_mode = #tpu.pipeline_mode<synchronous>, transform_indices = @transform_20, window_bounds = array<i64: 128, 128>}, {pipeline_mode = #tpu.pipeline_mode<synchronous>, transform_indices = @transform_21, window_bounds = array<i64: 1, 128>}, {pipeline_mode = #tpu.pipeline_mode<synchronous>, transform_indices = @transform_22, window_bounds = array<i64: 128, 8>}, {pipeline_mode = #tpu.pipeline_mode<synchronous>, transform_indices = @transform_23, window_bounds = array<i64: 128, 16>}, {pipeline_mode = #tpu.pipeline_mode<synchronous>, transform_indices = @transform_24, window_bounds = array<i64: 1, 128>}]} {
    %c0 = arith.constant 0 : index
    %c0_0 = arith.constant 0 : index
    %0 = vector.load %arg1[%c0, %c0_0] : memref<16x8xf32, #tpu.memory_space<vmem>>, vector<16x8xf32>
    %c0_1 = arith.constant 0 : index
    %c0_2 = arith.constant 0 : index
    %1 = vector.load %arg2[%c0_1, %c0_2] : memref<8x16xf32, #tpu.memory_space<vmem>>, vector<8x16xf32>
    %c0_3 = arith.constant 0 : index
    %c0_4 = arith.constant 0 : index
    %2 = vector.load %arg5[%c0_3, %c0_4] : memref<8x32xf32, #tpu.memory_space<vmem>>, vector<8x32xf32>
    %c0_5 = arith.constant 0 : index
    %c0_6 = arith.constant 0 : index
    %3 = vector.load %arg6[%c0_5, %c0_6] : memref<16x32xf32, #tpu.memory_space<vmem>>, vector<16x32xf32>
    %c0_7 = arith.constant 0 : index
    %c0_8 = arith.constant 0 : index
    %4 = vector.load %arg7[%c0_7, %c0_8] : memref<32x128xf32, #tpu.memory_space<vmem>>, vector<32x128xf32>
    %cst = arith.constant dense<0.000000e+00> : vector<8x128xf32>
    %5 = tpu.matmul %2, %4, %cst {dimension_numbers = #tpu.dot_dimension_numbers<[1], [0], [0], [1], [0, 0, 1, 1], [], []>} : vector<8x32xf32>, vector<32x128xf32>, vector<8x128xf32> -> vector<8x128xf32>
    %c0_9 = arith.constant 0 : index
    %c0_10 = arith.constant 0 : index
    %6 = vector.load %arg3[%c0_9, %c0_10] : memref<16x1xf32, #tpu.memory_space<vmem>>, vector<16x1xf32>
    %cst_11 = arith.constant dense<0.000000e+00> : vector<16x128xf32>
    %7 = tpu.matmul %0, %5, %cst_11 {dimension_numbers = #tpu.dot_dimension_numbers<[1], [0], [0], [1], [0, 0, 1, 1], [], []>} : vector<16x8xf32>, vector<8x128xf32>, vector<16x128xf32> -> vector<16x128xf32>
    %8 = vector.broadcast %6 : vector<16x1xf32> to vector<16x128xf32>
    %9 = arith.mulf %8, %7 : vector<16x128xf32>
    %c0_12 = arith.constant 0 : index
    %c0_13 = arith.constant 0 : index
    %10 = vector.load %arg8[%c0_12, %c0_13] : memref<32x128xf32, #tpu.memory_space<vmem>>, vector<32x128xf32>
    %cst_14 = arith.constant dense<0.000000e+00> : vector<16x128xf32>
    %11 = tpu.matmul %3, %10, %cst_14 {dimension_numbers = #tpu.dot_dimension_numbers<[1], [0], [0], [1], [0, 0, 1, 1], [], []>} : vector<16x32xf32>, vector<32x128xf32>, vector<16x128xf32> -> vector<16x128xf32>
    %12 = arith.addf %9, %11 : vector<16x128xf32>
    %c0_15 = arith.constant 0 : index
    %c0_16 = arith.constant 0 : index
    %13 = vector.load %arg9[%c0_15, %c0_16] : memref<1x128xf32, #tpu.memory_space<vmem>>, vector<1x128xf32>
    %14 = vector.broadcast %13 : vector<1x128xf32> to vector<16x128xf32>
    %15 = arith.addf %12, %14 : vector<16x128xf32>
    %cst_17 = arith.constant 0.000000e+00 : f32
    %16 = vector.broadcast %cst_17 : f32 to vector<16x128xf32>
    %17 = arith.maximumf %15, %16 : vector<16x128xf32>
    %c0_18 = arith.constant 0 : index
    %c0_19 = arith.constant 0 : index
    %18 = vector.load %arg10[%c0_18, %c0_19] : memref<32x128xf32, #tpu.memory_space<vmem>>, vector<32x128xf32>
    %cst_20 = arith.constant dense<0.000000e+00> : vector<16x128xf32>
    %19 = tpu.matmul %3, %18, %cst_20 {dimension_numbers = #tpu.dot_dimension_numbers<[1], [0], [0], [1], [0, 0, 1, 1], [], []>} : vector<16x32xf32>, vector<32x128xf32>, vector<16x128xf32> -> vector<16x128xf32>
    %c0_21 = arith.constant 0 : index
    %c0_22 = arith.constant 0 : index
    %20 = vector.load %arg4[%c0_21, %c0_22] : memref<8x1xf32, #tpu.memory_space<vmem>>, vector<8x1xf32>
    %cst_23 = arith.constant dense<0.000000e+00> : vector<8x128xf32>
    %21 = tpu.matmul %1, %19, %cst_23 {dimension_numbers = #tpu.dot_dimension_numbers<[1], [0], [0], [1], [0, 0, 1, 1], [], []>} : vector<8x16xf32>, vector<16x128xf32>, vector<8x128xf32> -> vector<8x128xf32>
    %22 = vector.broadcast %20 : vector<8x1xf32> to vector<8x128xf32>
    %23 = arith.mulf %22, %21 : vector<8x128xf32>
    %c0_24 = arith.constant 0 : index
    %c0_25 = arith.constant 0 : index
    %24 = vector.load %arg11[%c0_24, %c0_25] : memref<32x128xf32, #tpu.memory_space<vmem>>, vector<32x128xf32>
    %cst_26 = arith.constant dense<0.000000e+00> : vector<8x128xf32>
    %25 = tpu.matmul %2, %24, %cst_26 {dimension_numbers = #tpu.dot_dimension_numbers<[1], [0], [0], [1], [0, 0, 1, 1], [], []>} : vector<8x32xf32>, vector<32x128xf32>, vector<8x128xf32> -> vector<8x128xf32>
    %26 = arith.addf %23, %25 : vector<8x128xf32>
    %c0_27 = arith.constant 0 : index
    %c0_28 = arith.constant 0 : index
    %27 = vector.load %arg12[%c0_27, %c0_28] : memref<1x128xf32, #tpu.memory_space<vmem>>, vector<1x128xf32>
    %28 = vector.broadcast %27 : vector<1x128xf32> to vector<8x128xf32>
    %29 = arith.addf %26, %28 : vector<8x128xf32>
    %cst_29 = arith.constant 0.000000e+00 : f32
    %30 = vector.broadcast %cst_29 : f32 to vector<8x128xf32>
    %31 = arith.maximumf %29, %30 : vector<8x128xf32>
    %c0_30 = arith.constant 0 : index
    %c0_31 = arith.constant 0 : index
    %32 = vector.load %arg13[%c0_30, %c0_31] : memref<128x128xf32, #tpu.memory_space<vmem>>, vector<128x128xf32>
    %cst_32 = arith.constant dense<0.000000e+00> : vector<8x128xf32>
    %33 = tpu.matmul %31, %32, %cst_32 {dimension_numbers = #tpu.dot_dimension_numbers<[1], [0], [0], [1], [0, 0, 1, 1], [], []>} : vector<8x128xf32>, vector<128x128xf32>, vector<8x128xf32> -> vector<8x128xf32>
    %c0_33 = arith.constant 0 : index
    %c0_34 = arith.constant 0 : index
    %34 = vector.load %arg3[%c0_33, %c0_34] : memref<16x1xf32, #tpu.memory_space<vmem>>, vector<16x1xf32>
    %cst_35 = arith.constant dense<0.000000e+00> : vector<16x128xf32>
    %35 = tpu.matmul %0, %33, %cst_35 {dimension_numbers = #tpu.dot_dimension_numbers<[1], [0], [0], [1], [0, 0, 1, 1], [], []>} : vector<16x8xf32>, vector<8x128xf32>, vector<16x128xf32> -> vector<16x128xf32>
    %36 = vector.broadcast %34 : vector<16x1xf32> to vector<16x128xf32>
    %37 = arith.mulf %36, %35 : vector<16x128xf32>
    %c0_36 = arith.constant 0 : index
    %c0_37 = arith.constant 0 : index
    %38 = vector.load %arg14[%c0_36, %c0_37] : memref<128x128xf32, #tpu.memory_space<vmem>>, vector<128x128xf32>
    %cst_38 = arith.constant dense<0.000000e+00> : vector<16x128xf32>
    %39 = tpu.matmul %17, %38, %cst_38 {dimension_numbers = #tpu.dot_dimension_numbers<[1], [0], [0], [1], [0, 0, 1, 1], [], []>} : vector<16x128xf32>, vector<128x128xf32>, vector<16x128xf32> -> vector<16x128xf32>
    %40 = arith.addf %37, %39 : vector<16x128xf32>
    %c0_39 = arith.constant 0 : index
    %c0_40 = arith.constant 0 : index
    %41 = vector.load %arg15[%c0_39, %c0_40] : memref<1x128xf32, #tpu.memory_space<vmem>>, vector<1x128xf32>
    %42 = vector.broadcast %41 : vector<1x128xf32> to vector<16x128xf32>
    %43 = arith.addf %40, %42 : vector<16x128xf32>
    %c0_41 = arith.constant 0 : index
    %c0_42 = arith.constant 0 : index
    %44 = vector.load %arg16[%c0_41, %c0_42] : memref<128x128xf32, #tpu.memory_space<vmem>>, vector<128x128xf32>
    %cst_43 = arith.constant dense<0.000000e+00> : vector<16x128xf32>
    %45 = tpu.matmul %17, %44, %cst_43 {dimension_numbers = #tpu.dot_dimension_numbers<[1], [0], [0], [1], [0, 0, 1, 1], [], []>} : vector<16x128xf32>, vector<128x128xf32>, vector<16x128xf32> -> vector<16x128xf32>
    %c0_44 = arith.constant 0 : index
    %c0_45 = arith.constant 0 : index
    %46 = vector.load %arg4[%c0_44, %c0_45] : memref<8x1xf32, #tpu.memory_space<vmem>>, vector<8x1xf32>
    %cst_46 = arith.constant dense<0.000000e+00> : vector<8x128xf32>
    %47 = tpu.matmul %1, %45, %cst_46 {dimension_numbers = #tpu.dot_dimension_numbers<[1], [0], [0], [1], [0, 0, 1, 1], [], []>} : vector<8x16xf32>, vector<16x128xf32>, vector<8x128xf32> -> vector<8x128xf32>
    %48 = vector.broadcast %46 : vector<8x1xf32> to vector<8x128xf32>
    %49 = arith.mulf %48, %47 : vector<8x128xf32>
    %c0_47 = arith.constant 0 : index
    %c0_48 = arith.constant 0 : index
    %50 = vector.load %arg17[%c0_47, %c0_48] : memref<128x128xf32, #tpu.memory_space<vmem>>, vector<128x128xf32>
    %cst_49 = arith.constant dense<0.000000e+00> : vector<8x128xf32>
    %51 = tpu.matmul %31, %50, %cst_49 {dimension_numbers = #tpu.dot_dimension_numbers<[1], [0], [0], [1], [0, 0, 1, 1], [], []>} : vector<8x128xf32>, vector<128x128xf32>, vector<8x128xf32> -> vector<8x128xf32>
    %52 = arith.addf %49, %51 : vector<8x128xf32>
    %c0_50 = arith.constant 0 : index
    %c0_51 = arith.constant 0 : index
    %53 = vector.load %arg18[%c0_50, %c0_51] : memref<1x128xf32, #tpu.memory_space<vmem>>, vector<1x128xf32>
    %54 = vector.broadcast %53 : vector<1x128xf32> to vector<8x128xf32>
    %55 = arith.addf %52, %54 : vector<8x128xf32>
    %c0_52 = arith.constant 0 : index
    %c0_53 = arith.constant 0 : index
    %56 = vector.load %arg23[%c0_52, %c0_53] : memref<128x8xf32, #tpu.memory_space<vmem>>, vector<128x8xf32>
    %cst_54 = arith.constant dense<0.000000e+00> : vector<128x128xf32>
    %57 = tpu.matmul %56, %55, %cst_54 {dimension_numbers = #tpu.dot_dimension_numbers<[1], [0], [0], [1], [0, 0, 1, 1], [], []>} : vector<128x8xf32>, vector<8x128xf32>, vector<128x128xf32> -> vector<128x128xf32>
    %c0_55 = arith.constant 0 : index
    %c0_56 = arith.constant 0 : index
    %58 = vector.load %arg24[%c0_55, %c0_56] : memref<128x16xf32, #tpu.memory_space<vmem>>, vector<128x16xf32>
    %cst_57 = arith.constant dense<0.000000e+00> : vector<128x128xf32>
    %59 = tpu.matmul %58, %43, %cst_57 {dimension_numbers = #tpu.dot_dimension_numbers<[1], [0], [0], [1], [0, 0, 1, 1], [], []>} : vector<128x16xf32>, vector<16x128xf32>, vector<128x128xf32> -> vector<128x128xf32>
    %c0_58 = arith.constant 0 : index
    %c0_59 = arith.constant 0 : index
    %60 = vector.load %arg19[%c0_58, %c0_59] : memref<128x128xf32, #tpu.memory_space<vmem>>, vector<128x128xf32>
    %cst_60 = arith.constant dense<0.000000e+00> : vector<128x128xf32>
    %61 = tpu.matmul %57, %60, %cst_60 {dimension_numbers = #tpu.dot_dimension_numbers<[1], [0], [0], [1], [0, 0, 1, 1], [], []>} : vector<128x128xf32>, vector<128x128xf32>, vector<128x128xf32> -> vector<128x128xf32>
    %c0_61 = arith.constant 0 : index
    %c0_62 = arith.constant 0 : index
    %62 = vector.load %arg20[%c0_61, %c0_62] : memref<1x128xf32, #tpu.memory_space<vmem>>, vector<1x128xf32>
    %63 = vector.broadcast %62 : vector<1x128xf32> to vector<128x128xf32>
    %64 = arith.addf %61, %63 : vector<128x128xf32>
    %c0_63 = arith.constant 0 : index
    %c0_64 = arith.constant 0 : index
    %65 = vector.load %arg21[%c0_63, %c0_64] : memref<128x128xf32, #tpu.memory_space<vmem>>, vector<128x128xf32>
    %cst_65 = arith.constant dense<0.000000e+00> : vector<128x128xf32>
    %66 = tpu.matmul %59, %65, %cst_65 {dimension_numbers = #tpu.dot_dimension_numbers<[1], [0], [0], [1], [0, 0, 1, 1], [], []>} : vector<128x128xf32>, vector<128x128xf32>, vector<128x128xf32> -> vector<128x128xf32>
    %c0_66 = arith.constant 0 : index
    %c0_67 = arith.constant 0 : index
    %67 = vector.load %arg22[%c0_66, %c0_67] : memref<1x128xf32, #tpu.memory_space<vmem>>, vector<1x128xf32>
    %68 = vector.broadcast %67 : vector<1x128xf32> to vector<128x128xf32>
    %69 = arith.addf %66, %68 : vector<128x128xf32>
    %70 = arith.mulf %64, %69 : vector<128x128xf32>
    %cst_68 = arith.constant 1.000000e+00 : f32
    %71 = vector.broadcast %cst_68 : f32 to vector<8x128xf32>
    %72 = tpu.transpose %70, [1, 0] : vector<128x128xf32> -> vector<128x128xf32>
    %cst_69 = arith.constant dense<0.000000e+00> : vector<8x128xf32>
    %73 = tpu.matmul %71, %72, %cst_69 {dimension_numbers = #tpu.dot_dimension_numbers<[1], [0], [0], [1], [0, 0, 1, 1], [], []>} : vector<8x128xf32>, vector<128x128xf32>, vector<8x128xf32> -> vector<8x128xf32>
    %74 = vector.extract_strided_slice %73 {offsets = [0, 0], sizes = [1, 128], strides = [1, 1]} : vector<8x128xf32> to vector<1x128xf32>
    %c0_70 = arith.constant 0 : index
    %c0_71 = arith.constant 0 : index
    %75 = vector.load %arg25[%c0_70, %c0_71] : memref<1x128xf32, #tpu.memory_space<vmem>>, vector<1x128xf32>
    tpu.vector_store %arg25[%c0_70, %c0_71], %74 {strides = array<i32>} : memref<1x128xf32, #tpu.memory_space<vmem>>, vector<1x128xf32>,
    return
  }
  func.func @transform_0(%arg0: i32) -> (i32, i32) {
    %c0_i32 = arith.constant 0 : i32
    %c0_i32_0 = arith.constant 0 : i32
    %c0_i32_1 = arith.constant 0 : i32
    return %c0_i32, %c0_i32_0 : i32, i32
  }
  func.func @transform_1(%arg0: i32) -> (i32, i32) {
    %c0_i32 = arith.constant 0 : i32
    %c0_i32_0 = arith.constant 0 : i32
    %c0_i32_1 = arith.constant 0 : i32
    return %c0_i32, %c0_i32_0 : i32, i32
  }
  func.func @transform_2(%arg0: i32) -> (i32, i32) {
    %c0_i32 = arith.constant 0 : i32
    %c0_i32_0 = arith.constant 0 : i32
    %c0_i32_1 = arith.constant 0 : i32
    return %c0_i32, %c0_i32_0 : i32, i32
  }
  func.func @transform_3(%arg0: i32) -> (i32, i32) {
    %c0_i32 = arith.constant 0 : i32
    %c0_i32_0 = arith.constant 0 : i32
    %c0_i32_1 = arith.constant 0 : i32
    return %c0_i32, %c0_i32_0 : i32, i32
  }
  func.func @transform_4(%arg0: i32) -> (i32, i32) {
    %c0_i32 = arith.constant 0 : i32
    %c0_i32_0 = arith.constant 0 : i32
    %c0_i32_1 = arith.constant 0 : i32
    return %c0_i32, %c0_i32_0 : i32, i32
  }
  func.func @transform_5(%arg0: i32) -> (i32, i32) {
    %c0_i32 = arith.constant 0 : i32
    %c0_i32_0 = arith.constant 0 : i32
    %c0_i32_1 = arith.constant 0 : i32
    return %c0_i32, %c0_i32_0 : i32, i32
  }
  func.func @transform_6(%arg0: i32) -> (i32, i32) {
    %c0_i32 = arith.constant 0 : i32
    %c0_i32_0 = arith.constant 0 : i32
    %c0_i32_1 = arith.constant 0 : i32
    return %c0_i32, %c0_i32_0 : i32, i32
  }
  func.func @transform_7(%arg0: i32) -> (i32, i32) {
    %c0_i32 = arith.constant 0 : i32
    %c0_i32_0 = arith.constant 0 : i32
    %c0_i32_1 = arith.constant 0 : i32
    return %c0_i32, %c0_i32_0 : i32, i32
  }
  func.func @transform_8(%arg0: i32) -> (i32, i32) {
    %c0_i32 = arith.constant 0 : i32
    %c0_i32_0 = arith.constant 0 : i32
    %c0_i32_1 = arith.constant 0 : i32
    return %c0_i32, %c0_i32_0 : i32, i32
  }
  func.func @transform_9(%arg0: i32) -> (i32, i32) {
    %c0_i32 = arith.constant 0 : i32
    %c0_i32_0 = arith.constant 0 : i32
    %c0_i32_1 = arith.constant 0 : i32
    return %c0_i32, %c0_i32_0 : i32, i32
  }
  func.func @transform_10(%arg0: i32) -> (i32, i32) {
    %c0_i32 = arith.constant 0 : i32
    %c0_i32_0 = arith.constant 0 : i32
    %c0_i32_1 = arith.constant 0 : i32
    return %c0_i32, %c0_i32_0 : i32, i32
  }
  func.func @transform_11(%arg0: i32) -> (i32, i32) {
    %c0_i32 = arith.constant 0 : i32
    %c0_i32_0 = arith.constant 0 : i32
    %c0_i32_1 = arith.constant 0 : i32
    return %c0_i32, %c0_i32_0 : i32, i32
  }
  func.func @transform_12(%arg0: i32) -> (i32, i32) {
    %c0_i32 = arith.constant 0 : i32
    %c0_i32_0 = arith.constant 0 : i32
    %c0_i32_1 = arith.constant 0 : i32
    return %c0_i32, %c0_i32_0 : i32, i32
  }
  func.func @transform_13(%arg0: i32) -> (i32, i32) {
    %c0_i32 = arith.constant 0 : i32
    %c0_i32_0 = arith.constant 0 : i32
    %c0_i32_1 = arith.constant 0 : i32
    return %c0_i32, %c0_i32_0 : i32, i32
  }
  func.func @transform_14(%arg0: i32) -> (i32, i32) {
    %c0_i32 = arith.constant 0 : i32
    %c0_i32_0 = arith.constant 0 : i32
    %c0_i32_1 = arith.constant 0 : i32
    return %c0_i32, %c0_i32_0 : i32, i32
  }
  func.func @transform_15(%arg0: i32) -> (i32, i32) {
    %c0_i32 = arith.constant 0 : i32
    %c0_i32_0 = arith.constant 0 : i32
    %c0_i32_1 = arith.constant 0 : i32
    return %c0_i32, %c0_i32_0 : i32, i32
  }
  func.func @transform_16(%arg0: i32) -> (i32, i32) {
    %c0_i32 = arith.constant 0 : i32
    %c0_i32_0 = arith.constant 0 : i32
    %c0_i32_1 = arith.constant 0 : i32
    return %c0_i32, %c0_i32_0 : i32, i32
  }
  func.func @transform_17(%arg0: i32) -> (i32, i32) {
    %c0_i32 = arith.constant 0 : i32
    %c0_i32_0 = arith.constant 0 : i32
    %c0_i32_1 = arith.constant 0 : i32
    return %c0_i32, %c0_i32_0 : i32, i32
  }
  func.func @transform_18(%arg0: i32) -> (i32, i32) {
    %c0_i32 = arith.constant 0 : i32
    %c0_i32_0 = arith.constant 0 : i32
    %c0_i32_1 = arith.constant 0 : i32
    return %c0_i32, %c0_i32_0 : i32, i32
  }
  func.func @transform_19(%arg0: i32) -> (i32, i32) {
    %c0_i32 = arith.constant 0 : i32
    %c0_i32_0 = arith.constant 0 : i32
    %c0_i32_1 = arith.constant 0 : i32
    return %c0_i32, %c0_i32_0 : i32, i32
  }
  func.func @transform_20(%arg0: i32) -> (i32, i32) {
    %c0_i32 = arith.constant 0 : i32
    %c0_i32_0 = arith.constant 0 : i32
    %c0_i32_1 = arith.constant 0 : i32
    return %c0_i32, %c0_i32_0 : i32, i32
  }
  func.func @transform_21(%arg0: i32) -> (i32, i32) {
    %c0_i32 = arith.constant 0 : i32
    %c0_i32_0 = arith.constant 0 : i32
    %c0_i32_1 = arith.constant 0 : i32
    return %c0_i32, %c0_i32_0 : i32, i32
  }
  func.func @transform_22(%arg0: i32) -> (i32, i32) {
    %c0_i32 = arith.constant 0 : i32
    %c0_i32_0 = arith.constant 0 : i32
    %c0_i32_1 = arith.constant 0 : i32
    return %c0_i32, %c0_i32_0 : i32, i32
  }
  func.func @transform_23(%arg0: i32) -> (i32, i32) {
    %c0_i32 = arith.constant 0 : i32
    %c0_i32_0 = arith.constant 0 : i32
    %c0_i32_1 = arith.constant 0 : i32
    return %c0_i32, %c0_i32_0 : i32, i32
  }
  func.func @transform_24(%arg0: i32) -> (i32, i32) {
    %c0_i32 = arith.constant 0 : i32
    %c0_i32_0 = arith.constant 0 : i32
    %c0_i32_1 = arith.constant 0 : i32
    return %c0_i32, %c0_i32_0 : i32, i32
  }
}

</mosaic_0001>

<llo_original>
// kernel: tpu_custom_call.1
$region0: #{tpu_custom_call.1}
  #allocation0 [shape = 'u32[]', space=smem, size = 0x4, offset = 0x4, fixed_abs, tag = 'smem constant byte address 0x4 - core index']
  #allocation1 [shape = 'u32[72,128]{1,0:T(1,128)}', space=vmem, size = 0x9000, scoped, tag = 'internal scratch']
  %s0 = inlined_call_operand.vmem [shape: f32[16,8], index: 0, kind: input, shape index: {}]
  %s1 = inlined_call_operand.vmem [shape: f32[8,16], index: 1, kind: input, shape index: {}]
  %s2 = inlined_call_operand.vmem [shape: f32[16,1], index: 2, kind: input, shape index: {}]
  %s3 = inlined_call_operand.vmem [shape: f32[8,1], index: 3, kind: input, shape index: {}]
  %s4 = inlined_call_operand.hbm [shape: f32[8,32], index: 4, kind: input, shape index: {}]
  %s5 = inlined_call_operand.hbm [shape: f32[16,32], index: 5, kind: input, shape index: {}]
  %s6 = inlined_call_operand.vmem [shape: f32[32,128], index: 6, kind: input, shape index: {}]
  %s7 = inlined_call_operand.hbm [shape: f32[32,128], index: 7, kind: input, shape index: {}]
  %s8 = inlined_call_operand.vmem [shape: f32[1,128], index: 8, kind: input, shape index: {}]
  %s9 = inlined_call_operand.hbm [shape: f32[32,128], index: 9, kind: input, shape index: {}]
  %s10 = inlined_call_operand.hbm [shape: f32[32,128], index: 10, kind: input, shape index: {}]
  %s11 = inlined_call_operand.vmem [shape: f32[1,128], index: 11, kind: input, shape index: {}]
  %s12 = inlined_call_operand.vmem [shape: f32[128,128], index: 12, kind: input, shape index: {}]
  %s13 = inlined_call_operand.vmem [shape: f32[128,128], index: 13, kind: input, shape index: {}]
  %s14 = inlined_call_operand.vmem [shape: f32[1,128], index: 14, kind: input, shape index: {}]
  %s15 = inlined_call_operand.hbm [shape: f32[128,128], index: 15, kind: input, shape index: {}]
  %s16 = inlined_call_operand.hbm [shape: f32[128,128], index: 16, kind: input, shape index: {}]
  %s17 = inlined_call_operand.vmem [shape: f32[1,128], index: 17, kind: input, shape index: {}]
  %s18 = inlined_call_operand.hbm [shape: f32[128,128], index: 18, kind: input, shape index: {}]
  %s19 = inlined_call_operand.vmem [shape: f32[1,128], index: 19, kind: input, shape index: {}]
  %s20 = inlined_call_operand.hbm [shape: f32[128,128], index: 20, kind: input, shape index: {}]
  %s21 = inlined_call_operand.vmem [shape: f32[1,128], index: 21, kind: input, shape index: {}]
  %s22 = inlined_call_operand.vmem [shape: f32[128,8], index: 22, kind: input, shape index: {}]
  %s23 = inlined_call_operand.vmem [shape: f32[128,16], index: 23, kind: input, shape index: {}]
  %s24 = inlined_call_operand.hbm [shape: f32[1,128], index: 24, kind: output, shape index: {}]
  %s25 = sld [smem:[#allocation0]]
  $region142: #{tpu_custom_call.1} parent=0
    _
  %s27 = ssub.s32 1, %s25
  %s28 = scalar_select 0, %s27, %s25
  $region1: #{tpu_custom_call.1} parent=0
    #allocation2 [shape = 'u8[4096]{0}', space=vmem, size = 0x1000, scoped, tag = 'input window, operand 4, single buffered']
    #allocation3 [shape = 's32[1]{0}', space=sflag, size = 0x4, scoped, tag = 'scoped memory for tpu_custom_call.1']
    #allocation4 [shape = 's32[1]{0}', space=sflag, size = 0x4, scoped, tag = 'scoped memory for tpu_custom_call.1']
    #allocation5 [shape = 'u8[8192]{0}', space=vmem, size = 0x2000, scoped, tag = 'input window, operand 5, single buffered']
    #allocation6 [shape = 's32[1]{0}', space=sflag, size = 0x4, scoped, tag = 'scoped memory for tpu_custom_call.1']
    #allocation7 [shape = 'u8[16384]{0}', space=vmem, size = 0x4000, scoped, tag = 'input window, operand 7, single buffered']
    #allocation8 [shape = 'u8[16384]{0}', space=vmem, size = 0x4000, scoped, tag = 'input window, operand 9, single buffered']
    #allocation9 [shape = 's32[1]{0}', space=sflag, size = 0x4, scoped, tag = 'scoped memory for tpu_custom_call.1']
    #allocation10 [shape = 'u8[16384]{0}', space=vmem, size = 0x4000, scoped, tag = 'input window, operand 10, single buffered']
    #allocation11 [shape = 'u8[65536]{0}', space=vmem, size = 0x10000, scoped, tag = 'input window, operand 15, single buffered']
    #allocation12 [shape = 's32[1]{0}', space=sflag, size = 0x4, scoped, tag = 'scoped memory for tpu_custom_call.1']
    #allocation13 [shape = 'u8[65536]{0}', space=vmem, size = 0x10000, scoped, tag = 'input window, operand 16, single buffered']
    #allocation14 [shape = 'u8[65536]{0}', space=vmem, size = 0x10000, scoped, tag = 'input window, operand 18, single buffered']
    #allocation15 [shape = 's32[1]{0}', space=sflag, size = 0x4, scoped, tag = 'scoped memory for tpu_custom_call.1']
    #allocation16 [shape = 'u8[65536]{0}', space=vmem, size = 0x10000, scoped, tag = 'input window, operand 20, single buffered']
    #allocation17 [shape = 'u8[512]{0}', space=vmem, size = 0x400, scoped, tag = 'output window, operand 0, single buffered']
    %29 = vsyncpa [#allocation3], 0
    %30 = vsyncpa [#allocation6], 0
    %31 = vsyncpa [#allocation9], 0
    %32 = vsyncpa [#allocation12], 0
    %33 = vsyncpa [#allocation15], 0
    %34 = vsyncpa [#allocation4], 0
    // Predicated region
    $region2: #{tpu_custom_call.1} parent=1 // pred_check
      _
    $region3: #{tpu_custom_call.1} parent=1 // pred_check_branch
      %36 = sbr.rel (0) target = $region5
    $region4: #{tpu_custom_call.1} parent=1 // pred_region
      _
    $region5: #{tpu_custom_call.1} parent=1 // pred_fallthru
      _
    // Predicated region
    $region6: #{tpu_custom_call.1} parent=1 // pred_check
      _
    $region7: #{tpu_custom_call.1} parent=1 // pred_check_branch
      %38 = sbr.rel (0) target = $region9
    $region8: #{tpu_custom_call.1} parent=1 // pred_region
      _
    $region9: #{tpu_custom_call.1} parent=1 // pred_fallthru
      _
    // Predicated region
    $region10: #{tpu_custom_call.1} parent=1 // pred_check
      _
    $region11: #{tpu_custom_call.1} parent=1 // pred_check_branch
      %40 = sbr.rel (0) target = $region13
    $region12: #{tpu_custom_call.1} parent=1 // pred_region
      _
    $region13: #{tpu_custom_call.1} parent=1 // pred_fallthru
      _
    // Predicated region
    $region14: #{tpu_custom_call.1} parent=1 // pred_check
      _
    $region15: #{tpu_custom_call.1} parent=1 // pred_check_branch
      %42 = sbr.rel (0) target = $region17
    $region16: #{tpu_custom_call.1} parent=1 // pred_region
      _
    $region17: #{tpu_custom_call.1} parent=1 // pred_fallthru
      _
    // Predicated region
    $region18: #{tpu_custom_call.1} parent=1 // pred_check
      _
    $region19: #{tpu_custom_call.1} parent=1 // pred_check_branch
      %44 = sbr.rel (0) target = $region21
    $region20: #{tpu_custom_call.1} parent=1 // pred_region
      %46 = vsyncadd [#allocation3], 0
      %s48 = sshll.u32 %s4, 4
      %s49 = int_to_ptr.hbm [resolvable:$true] %s48
      %s50 = sshll.u32 [#allocation2], 4
      %s51 = int_to_ptr.vmem [resolvable:$true] %s50
      %53 = dma.hbm_to_vmem [thread:$0]  %s49, 128, %s51, [#allocation3]
    $region21: #{tpu_custom_call.1} parent=1 // pred_fallthru
      _
    // Predicated region
    $region22: #{tpu_custom_call.1} parent=1 // pred_check
      _
    $region23: #{tpu_custom_call.1} parent=1 // pred_check_branch
      %55 = sbr.rel (0) target = $region25
    $region24: #{tpu_custom_call.1} parent=1 // pred_region
      %57 = vsyncadd [#allocation6], 0
      %s58 = sshll.u32 %s5, 4
      %s59 = int_to_ptr.hbm [resolvable:$true] %s58
      %s60 = sshll.u32 [#allocation5], 4
      %s61 = int_to_ptr.vmem [resolvable:$true] %s60
      %66 = dma.hbm_to_vmem [thread:$0]  %s59, 256, %s61, [#allocation6], 128, 128, 8
    $region25: #{tpu_custom_call.1} parent=1 // pred_fallthru
      _
    // Predicated region
    $region26: #{tpu_custom_call.1} parent=1 // pred_check
      _
    $region27: #{tpu_custom_call.1} parent=1 // pred_check_branch
      %68 = sbr.rel (0) target = $region29
    $region28: #{tpu_custom_call.1} parent=1 // pred_region
      _
    $region29: #{tpu_custom_call.1} parent=1 // pred_fallthru
      _
    // Predicated region
    $region30: #{tpu_custom_call.1} parent=1 // pred_check
      _
    $region31: #{tpu_custom_call.1} parent=1 // pred_check_branch
      %70 = sbr.rel (0) target = $region33
    $region32: #{tpu_custom_call.1} parent=1 // pred_region
      %72 = vsyncadd [#allocation6], 0
      %s73 = sshll.u32 %s7, 4
      %s74 = int_to_ptr.hbm [resolvable:$true] %s73
      %s75 = sshll.u32 [#allocation7], 4
      %s76 = int_to_ptr.vmem [resolvable:$true] %s75
      %81 = dma.hbm_to_vmem [thread:$0]  %s74, 512, %s76, [#allocation6], 128, 128, 8
    $region33: #{tpu_custom_call.1} parent=1 // pred_fallthru
      _
    // Predicated region
    $region34: #{tpu_custom_call.1} parent=1 // pred_check
      _
    $region35: #{tpu_custom_call.1} parent=1 // pred_check_branch
      %83 = sbr.rel (0) target = $region37
    $region36: #{tpu_custom_call.1} parent=1 // pred_region
      _
    $region37: #{tpu_custom_call.1} parent=1 // pred_fallthru
      _
    // Predicated region
    $region38: #{tpu_custom_call.1} parent=1 // pred_check
      _
    $region39: #{tpu_custom_call.1} parent=1 // pred_check_branch
      %85 = sbr.rel (0) target = $region41
    $region40: #{tpu_custom_call.1} parent=1 // pred_region
      %87 = vsyncadd [#allocation9], 0
      %s88 = sshll.u32 %s9, 4
      %s89 = int_to_ptr.hbm [resolvable:$true] %s88
      %s90 = sshll.u32 [#allocation8], 4
      %s91 = int_to_ptr.vmem [resolvable:$true] %s90
      %96 = dma.hbm_to_vmem [thread:$0]  %s89, 512, %s91, [#allocation9], 128, 128, 8
    $region41: #{tpu_custom_call.1} parent=1 // pred_fallthru
      _
    // Predicated region
    $region42: #{tpu_custom_call.1} parent=1 // pred_check
      _
    $region43: #{tpu_custom_call.1} parent=1 // pred_check_branch
      %98 = sbr.rel (0) target = $region45
    $region44: #{tpu_custom_call.1} parent=1 // pred_region
      %100 = vsyncadd [#allocation9], 0
      %s101 = sshll.u32 %s10, 4
      %s102 = int_to_ptr.hbm [resolvable:$true] %s101
      %s103 = sshll.u32 [#allocation10], 4
      %s104 = int_to_ptr.vmem [resolvable:$true] %s103
      %109 = dma.hbm_to_vmem [thread:$0]  %s102, 512, %s104, [#allocation9], 128, 128, 8
    $region45: #{tpu_custom_call.1} parent=1 // pred_fallthru
      _
    // Predicated region
    $region46: #{tpu_custom_call.1} parent=1 // pred_check
      _
    $region47: #{tpu_custom_call.1} parent=1 // pred_check_branch
      %111 = sbr.rel (0) target = $region49
    $region48: #{tpu_custom_call.1} parent=1 // pred_region
      _
    $region49: #{tpu_custom_call.1} parent=1 // pred_fallthru
      _
    // Predicated region
    $region50: #{tpu_custom_call.1} parent=1 // pred_check
      _
    $region51: #{tpu_custom_call.1} parent=1 // pred_check_branch
      %113 = sbr.rel (0) target = $region53
    $region52: #{tpu_custom_call.1} parent=1 // pred_region
      _
    $region53: #{tpu_custom_call.1} parent=1 // pred_fallthru
      _
    // Predicated region
    $region54: #{tpu_custom_call.1} parent=1 // pred_check
      _
    $region55: #{tpu_custom_call.1} parent=1 // pred_check_branch
      %115 = sbr.rel (0) target = $region57
    $region56: #{tpu_custom_call.1} parent=1 // pred_region
      _
    $region57: #{tpu_custom_call.1} parent=1 // pred_fallthru
      _
    // Predicated region
    $region58: #{tpu_custom_call.1} parent=1 // pred_check
      _
    $region59: #{tpu_custom_call.1} parent=1 // pred_check_branch
      %117 = sbr.rel (0) target = $region61
    $region60: #{tpu_custom_call.1} parent=1 // pred_region
      _
    $region61: #{tpu_custom_call.1} parent=1 // pred_fallthru
      _
    // Predicated region
    $region62: #{tpu_custom_call.1} parent=1 // pred_check
      _
    $region63: #{tpu_custom_call.1} parent=1 // pred_check_branch
      %119 = sbr.rel (0) target = $region65
    $region64: #{tpu_custom_call.1} parent=1 // pred_region
      %121 = vsyncadd [#allocation12], 0
      %s122 = sshll.u32 %s15, 4
      %s123 = int_to_ptr.hbm [resolvable:$true] %s122
      %s124 = sshll.u32 [#allocation11], 4
      %s125 = int_to_ptr.vmem [resolvable:$true] %s124
      %130 = dma.hbm_to_vmem [thread:$0]  %s123, 2048, %s125, [#allocation12], 128, 128, 8
    $region65: #{tpu_custom_call.1} parent=1 // pred_fallthru
      _
    // Predicated region
    $region66: #{tpu_custom_call.1} parent=1 // pred_check
      _
    $region67: #{tpu_custom_call.1} parent=1 // pred_check_branch
      %132 = sbr.rel (0) target = $region69
    $region68: #{tpu_custom_call.1} parent=1 // pred_region
      %134 = vsyncadd [#allocation12], 0
      %s135 = sshll.u32 %s16, 4
      %s136 = int_to_ptr.hbm [resolvable:$true] %s135
      %s137 = sshll.u32 [#allocation13], 4
      %s138 = int_to_ptr.vmem [resolvable:$true] %s137
      %143 = dma.hbm_to_vmem [thread:$0]  %s136, 2048, %s138, [#allocation12], 128, 128, 8
    $region69: #{tpu_custom_call.1} parent=1 // pred_fallthru
      _
    // Predicated region
    $region70: #{tpu_custom_call.1} parent=1 // pred_check
      _
    $region71: #{tpu_custom_call.1} parent=1 // pred_check_branch
      %145 = sbr.rel (0) target = $region73
    $region72: #{tpu_custom_call.1} parent=1 // pred_region
      _
    $region73: #{tpu_custom_call.1} parent=1 // pred_fallthru
      _
    // Predicated region
    $region74: #{tpu_custom_call.1} parent=1 // pred_check
      _
    $region75: #{tpu_custom_call.1} parent=1 // pred_check_branch
      %147 = sbr.rel (0) target = $region77
    $region76: #{tpu_custom_call.1} parent=1 // pred_region
      %149 = vsyncadd [#allocation15], 0
      %s150 = sshll.u32 %s18, 4
      %s151 = int_to_ptr.hbm [resolvable:$true] %s150
      %s152 = sshll.u32 [#allocation14], 4
      %s153 = int_to_ptr.vmem [resolvable:$true] %s152
      %158 = dma.hbm_to_vmem [thread:$0]  %s151, 2048, %s153, [#allocation15], 128, 128, 8
    $region77: #{tpu_custom_call.1} parent=1 // pred_fallthru
      _
    // Predicated region
    $region78: #{tpu_custom_call.1} parent=1 // pred_check
      _
    $region79: #{tpu_custom_call.1} parent=1 // pred_check_branch
      %160 = sbr.rel (0) target = $region81
    $region80: #{tpu_custom_call.1} parent=1 // pred_region
      _
    $region81: #{tpu_custom_call.1} parent=1 // pred_fallthru
      _
    // Predicated region
    $region82: #{tpu_custom_call.1} parent=1 // pred_check
      _
    $region83: #{tpu_custom_call.1} parent=1 // pred_check_branch
      %162 = sbr.rel (0) target = $region85
    $region84: #{tpu_custom_call.1} parent=1 // pred_region
      %164 = vsyncadd [#allocation15], 0
      %s165 = sshll.u32 %s20, 4
      %s166 = int_to_ptr.hbm [resolvable:$true] %s165
      %s167 = sshll.u32 [#allocation16], 4
      %s168 = int_to_ptr.vmem [resolvable:$true] %s167
      %173 = dma.hbm_to_vmem [thread:$0]  %s166, 2048, %s168, [#allocation15], 128, 128, 8
    $region85: #{tpu_custom_call.1} parent=1 // pred_fallthru
      _
    // Predicated region
    $region86: #{tpu_custom_call.1} parent=1 // pred_check
      _
    $region87: #{tpu_custom_call.1} parent=1 // pred_check_branch
      %175 = sbr.rel (0) target = $region89
    $region88: #{tpu_custom_call.1} parent=1 // pred_region
      _
    $region89: #{tpu_custom_call.1} parent=1 // pred_fallthru
      _
    // Predicated region
    $region90: #{tpu_custom_call.1} parent=1 // pred_check
      _
    $region91: #{tpu_custom_call.1} parent=1 // pred_check_branch
      %177 = sbr.rel (0) target = $region93
    $region92: #{tpu_custom_call.1} parent=1 // pred_region
      _
    $region93: #{tpu_custom_call.1} parent=1 // pred_fallthru
      _
    // Predicated region
    $region94: #{tpu_custom_call.1} parent=1 // pred_check
      _
    $region95: #{tpu_custom_call.1} parent=1 // pred_check_branch
      %179 = sbr.rel (0) target = $region97
    $region96: #{tpu_custom_call.1} parent=1 // pred_region
      _
    $region97: #{tpu_custom_call.1} parent=1 // pred_fallthru
      _
    // Predicated region
    $region98: #{tpu_custom_call.1} parent=1 // pred_check
      _
    $region99: #{tpu_custom_call.1} parent=1 // pred_check_branch
      %181 = sbr.rel (0) target = $region101
    $region100: #{tpu_custom_call.1} parent=1 // pred_region
      %183 = dma.done [#allocation3], 128
    $region101: #{tpu_custom_call.1} parent=1 // pred_fallthru
      _
    // Predicated region
    $region102: #{tpu_custom_call.1} parent=1 // pred_check
      _
    $region103: #{tpu_custom_call.1} parent=1 // pred_check_branch
      %185 = sbr.rel (0) target = $region105
    $region104: #{tpu_custom_call.1} parent=1 // pred_region
      %187 = dma.done [#allocation6], 256
    $region105: #{tpu_custom_call.1} parent=1 // pred_fallthru
      _
    // Predicated region
    $region106: #{tpu_custom_call.1} parent=1 // pred_check
      _
    $region107: #{tpu_custom_call.1} parent=1 // pred_check_branch
      %189 = sbr.rel (0) target = $region109
    $region108: #{tpu_custom_call.1} parent=1 // pred_region
      %191 = dma.done [#allocation6], 512
    $region109: #{tpu_custom_call.1} parent=1 // pred_fallthru
      _
    // Predicated region
    $region110: #{tpu_custom_call.1} parent=1 // pred_check
      _
    $region111: #{tpu_custom_call.1} parent=1 // pred_check_branch
      %193 = sbr.rel (0) target = $region113
    $region112: #{tpu_custom_call.1} parent=1 // pred_region
      %195 = dma.done [#allocation9], 512
    $region113: #{tpu_custom_call.1} parent=1 // pred_fallthru
      _
    // Predicated region
    $region114: #{tpu_custom_call.1} parent=1 // pred_check
      _
    $region115: #{tpu_custom_call.1} parent=1 // pred_check_branch
      %197 = sbr.rel (0) target = $region117
    $region116: #{tpu_custom_call.1} parent=1 // pred_region
      %199 = dma.done [#allocation9], 512
    $region117: #{tpu_custom_call.1} parent=1 // pred_fallthru
      _
    // Predicated region
    $region118: #{tpu_custom_call.1} parent=1 // pred_check
      _
    $region119: #{tpu_custom_call.1} parent=1 // pred_check_branch
      %201 = sbr.rel (0) target = $region121
    $region120: #{tpu_custom_call.1} parent=1 // pred_region
      %203 = dma.done [#allocation12], 2048
    $region121: #{tpu_custom_call.1} parent=1 // pred_fallthru
      _
    // Predicated region
    $region122: #{tpu_custom_call.1} parent=1 // pred_check
      _
    $region123: #{tpu_custom_call.1} parent=1 // pred_check_branch
      %205 = sbr.rel (0) target = $region125
    $region124: #{tpu_custom_call.1} parent=1 // pred_region
      %207 = dma.done [#allocation12], 2048
    $region125: #{tpu_custom_call.1} parent=1 // pred_fallthru
      _
    // Predicated region
    $region126: #{tpu_custom_call.1} parent=1 // pred_check
      _
    $region127: #{tpu_custom_call.1} parent=1 // pred_check_branch
      %209 = sbr.rel (0) target = $region129
    $region128: #{tpu_custom_call.1} parent=1 // pred_region
      %211 = dma.done [#allocation15], 2048
    $region129: #{tpu_custom_call.1} parent=1 // pred_fallthru
      _
    // Predicated region
    $region130: #{tpu_custom_call.1} parent=1 // pred_check
      _
    $region131: #{tpu_custom_call.1} parent=1 // pred_check_branch
      %213 = sbr.rel (0) target = $region133
    $region132: #{tpu_custom_call.1} parent=1 // pred_region
      %215 = dma.done [#allocation15], 2048
    $region133: #{tpu_custom_call.1} parent=1 // pred_fallthru
      _
    %v216 = vld [vmem:[%s0] sm:$0xff]
    %v217 = vld [vmem:[%s0 + $0x8] sm:$0xff]
    %v218 = vld [vmem:[%s1] sm:$0xff]
    %v219 = vld [vmem:[#allocation2] sm:$0xff]
    %v220 = vld [vmem:[#allocation5] sm:$0xff]
    %v221 = vld [vmem:[#allocation5 + $0x8] sm:$0xff]
    %v222 = vld [vmem:[%s6] sm:$0xff]
    %v223 = vld [vmem:[%s6 + $0x8] sm:$0xff]
    %v224 = vld [vmem:[%s6 + $0x10] sm:$0xff]
    %v225 = vld [vmem:[%s6 + $0x18] sm:$0xff]
    %vm226 = vcmask 261120
    %v228 = vsel %vm226, %v219, 0
    %230 = vmatpush.msra.mxu0 0.0
    %231 = vmatpush.msra.mxu0 0.0
    %232 = vmatpush.msra.mxu0 0.0
    %233 = vmatpush.msra.mxu0 0.0
    %234 = vmatpush.msra.mxu0 0.0
    %235 = vmatpush.msra.mxu0 0.0
    %236 = vmatpush.msra.mxu0 0.0
    %237 = vmatpush.msra.mxu0 0.0
    %238 = vmatpush.msra.mxu0 0.0
    %239 = vmatpush.msra.mxu0 0.0
    %240 = vmatpush.msra.mxu0 0.0
    %241 = vmatpush.msra.mxu0 0.0
    %242 = vmatpush.msra.mxu0 %v225
    %243 = vmatpush.msra.mxu0 %v224
    %244 = vmatpush.msra.mxu0 %v223
    %245 = vmatpush.msra.mxu0 %v222
    %246 = vmatmul.f32.gmra.mxu0 %v228
    %v247 = vpop.f32.mrf.mxu0
    %v248 = vadd.f32 0.0, %v247
    %249 = vdwg.mxu0
    %v250 = vld [vmem:[%s2] sm:$0xff]
    %v251 = vld [vmem:[%s2 + $0x8] sm:$0xff]
    %vm252 = vcmask 64512
    %v254 = vsel %vm252, %v216, 0
    %v257 = vsel %vm252, %v217, 0
    %259 = vmatpush.msra.mxu0 0.0
    %260 = vmatpush.msra.mxu0 0.0
    %261 = vmatpush.msra.mxu0 0.0
    %262 = vmatpush.msra.mxu0 0.0
    %263 = vmatpush.msra.mxu0 0.0
    %264 = vmatpush.msra.mxu0 0.0
    %265 = vmatpush.msra.mxu0 0.0
    %266 = vmatpush.msra.mxu0 0.0
    %267 = vmatpush.msra.mxu0 0.0
    %268 = vmatpush.msra.mxu0 0.0
    %269 = vmatpush.msra.mxu0 0.0
    %270 = vmatpush.msra.mxu0 0.0
    %271 = vmatpush.msra.mxu0 0.0
    %272 = vmatpush.msra.mxu0 0.0
    %273 = vmatpush.msra.mxu0 0.0
    %274 = vmatpush.msra.mxu0 %v248
    %275 = vmatmul.f32.gmra.mxu0 %v254
    %v276 = vpop.f32.mrf.mxu0
    %v277 = vadd.f32 0.0, %v276
    %278 = vmatmul.f32.gmra.mxu0 %v257
    %v279 = vpop.f32.mrf.mxu0
    %v280 = vadd.f32 0.0, %v279
    %281 = vdwg.mxu0
    %283 = vset.pattern.permute.xlu0 0
    %284 = vperm.xlu0 %283, %v250
    %v285 = vpop.permute.xlu0 %284
    %288 = vset.pattern.permute.xlu0 0
    %289 = vperm.xlu0 %288, %v251
    %v290 = vpop.permute.xlu0 %289
    %v292 = vmul.f32 %v285, %v277
    %v293 = vmul.f32 %v290, %v280
    %v294 = vld [vmem:[#allocation7] sm:$0xff]
    %v295 = vld [vmem:[#allocation7 + $0x8] sm:$0xff]
    %v296 = vld [vmem:[#allocation7 + $0x10] sm:$0xff]
    %v297 = vld [vmem:[#allocation7 + $0x18] sm:$0xff]
    %v299 = vsel %vm226, %v220, 0
    %v302 = vsel %vm226, %v221, 0
    %304 = vmatpush.msra.mxu0 0.0
    %305 = vmatpush.msra.mxu0 0.0
    %306 = vmatpush.msra.mxu0 0.0
    %307 = vmatpush.msra.mxu0 0.0
    %308 = vmatpush.msra.mxu0 0.0
    %309 = vmatpush.msra.mxu0 0.0
    %310 = vmatpush.msra.mxu0 0.0
    %311 = vmatpush.msra.mxu0 0.0
    %312 = vmatpush.msra.mxu0 0.0
    %313 = vmatpush.msra.mxu0 0.0
    %314 = vmatpush.msra.mxu0 0.0
    %315 = vmatpush.msra.mxu0 0.0
    %316 = vmatpush.msra.mxu0 %v297
    %317 = vmatpush.msra.mxu0 %v296
    %318 = vmatpush.msra.mxu0 %v295
    %319 = vmatpush.msra.mxu0 %v294
    %320 = vmatmul.f32.gmra.mxu0 %v299
    %v321 = vpop.f32.mrf.mxu0
    %v322 = vadd.f32 0.0, %v321
    %323 = vmatmul.f32.gmra.mxu0 %v302
    %v324 = vpop.f32.mrf.mxu0
    %v325 = vadd.f32 0.0, %v324
    %326 = vdwg.mxu0
    %v327 = vadd.f32 %v292, %v322
    %v328 = vadd.f32 %v293, %v325
    %v329 = vld [vmem:[%s8] sm:$0x1]
    %v331 = vperm.slane %v329, 0
    %v333 = vadd.f32 %v327, %v331
    %v334 = vadd.f32 %v328, %v331
    %v335 = vmax.f32 %v333, 0.0
    %v336 = vmax.f32 %v334, 0.0
    %v337 = vld [vmem:[#allocation8] sm:$0xff]
    %v338 = vld [vmem:[#allocation8 + $0x8] sm:$0xff]
    %v339 = vld [vmem:[#allocation8 + $0x10] sm:$0xff]
    %v340 = vld [vmem:[#allocation8 + $0x18] sm:$0xff]
    %341 = vmatpush.msra.mxu0 0.0
    %342 = vmatpush.msra.mxu0 0.0
    %343 = vmatpush.msra.mxu0 0.0
    %344 = vmatpush.msra.mxu0 0.0
    %345 = vmatpush.msra.mxu0 0.0
    %346 = vmatpush.msra.mxu0 0.0
    %347 = vmatpush.msra.mxu0 0.0
    %348 = vmatpush.msra.mxu0 0.0
    %349 = vmatpush.msra.mxu0 0.0
    %350 = vmatpush.msra.mxu0 0.0
    %351 = vmatpush.msra.mxu0 0.0
    %352 = vmatpush.msra.mxu0 0.0
    %353 = vmatpush.msra.mxu0 %v340
    %354 = vmatpush.msra.mxu0 %v339
    %355 = vmatpush.msra.mxu0 %v338
    %356 = vmatpush.msra.mxu0 %v337
    %357 = vmatmul.f32.gmra.mxu0 %v299
    %v358 = vpop.f32.mrf.mxu0
    %v359 = vadd.f32 0.0, %v358
    %360 = vmatmul.f32.gmra.mxu0 %v302
    %v361 = vpop.f32.mrf.mxu0
    %v362 = vadd.f32 0.0, %v361
    %363 = vdwg.mxu0
    %v364 = vld [vmem:[%s3] sm:$0xff]
    %vm365 = vcmask 130048
    %v367 = vsel %vm365, %v218, 0
    %369 = vmatpush.msra.mxu0 0.0
    %370 = vmatpush.msra.mxu0 0.0
    %371 = vmatpush.msra.mxu0 0.0
    %372 = vmatpush.msra.mxu0 0.0
    %373 = vmatpush.msra.mxu0 0.0
    %374 = vmatpush.msra.mxu0 0.0
    %375 = vmatpush.msra.mxu0 0.0
    %376 = vmatpush.msra.mxu0 0.0
    %377 = vmatpush.msra.mxu0 0.0
    %378 = vmatpush.msra.mxu0 0.0
    %379 = vmatpush.msra.mxu0 0.0
    %380 = vmatpush.msra.mxu0 0.0
    %381 = vmatpush.msra.mxu0 0.0
    %382 = vmatpush.msra.mxu0 0.0
    %383 = vmatpush.msra.mxu0 %v362
    %384 = vmatpush.msra.mxu0 %v359
    %385 = vmatmul.f32.gmra.mxu0 %v367
    %v386 = vpop.f32.mrf.mxu0
    %v387 = vadd.f32 0.0, %v386
    %388 = vdwg.mxu0
    %390 = vset.pattern.permute.xlu0 0
    %391 = vperm.xlu0 %390, %v364
    %v392 = vpop.permute.xlu0 %391
    %v394 = vmul.f32 %v392, %v387
    %v395 = vld [vmem:[#allocation10] sm:$0xff]
    %v396 = vld [vmem:[#allocation10 + $0x8] sm:$0xff]
    %v397 = vld [vmem:[#allocation10 + $0x10] sm:$0xff]
    %v398 = vld [vmem:[#allocation10 + $0x18] sm:$0xff]
    %399 = vmatpush.msra.mxu0 0.0
    %400 = vmatpush.msra.mxu0 0.0
    %401 = vmatpush.msra.mxu0 0.0
    %402 = vmatpush.msra.mxu0 0.0
    %403 = vmatpush.msra.mxu0 0.0
    %404 = vmatpush.msra.mxu0 0.0
    %405 = vmatpush.msra.mxu0 0.0
    %406 = vmatpush.msra.mxu0 0.0
    %407 = vmatpush.msra.mxu0 0.0
    %408 = vmatpush.msra.mxu0 0.0
    %409 = vmatpush.msra.mxu0 0.0
    %410 = vmatpush.msra.mxu0 0.0
    %411 = vmatpush.msra.mxu0 %v398
    %412 = vmatpush.msra.mxu0 %v397
    %413 = vmatpush.msra.mxu0 %v396
    %414 = vmatpush.msra.mxu0 %v395
    %415 = vmatmul.f32.gmra.mxu0 %v228
    %v416 = vpop.f32.mrf.mxu0
    %v417 = vadd.f32 0.0, %v416
    %418 = vdwg.mxu0
    %v419 = vadd.f32 %v394, %v417
    %v420 = vld [vmem:[%s11] sm:$0x1]
    %v422 = vperm.slane %v420, 0
    %v424 = vadd.f32 %v419, %v422
    %v425 = vmax.f32 %v424, 0.0
    %v426 = vld [vmem:[%s12] sm:$0xff]
    %v427 = vld [vmem:[%s12 + $0x8] sm:$0xff]
    %v428 = vld [vmem:[%s12 + $0x10] sm:$0xff]
    %v429 = vld [vmem:[%s12 + $0x18] sm:$0xff]
    %v430 = vld [vmem:[%s12 + $0x20] sm:$0xff]
    %v431 = vld [vmem:[%s12 + $0x28] sm:$0xff]
    %v432 = vld [vmem:[%s12 + $0x30] sm:$0xff]
    %v433 = vld [vmem:[%s12 + $0x38] sm:$0xff]
    %v434 = vld [vmem:[%s12 + $0x40] sm:$0xff]
    %v435 = vld [vmem:[%s12 + $0x48] sm:$0xff]
    %v436 = vld [vmem:[%s12 + $0x50] sm:$0xff]
    %v437 = vld [vmem:[%s12 + $0x58] sm:$0xff]
    %v438 = vld [vmem:[%s12 + $0x60] sm:$0xff]
    %v439 = vld [vmem:[%s12 + $0x68] sm:$0xff]
    %v440 = vld [vmem:[%s12 + $0x70] sm:$0xff]
    %v441 = vld [vmem:[%s12 + $0x78] sm:$0xff]
    %442 = vmatpush.msra.mxu0 %v441
    %443 = vmatpush.msra.mxu0 %v440
    %444 = vmatpush.msra.mxu0 %v439
    %445 = vmatpush.msra.mxu0 %v438
    %446 = vmatpush.msra.mxu0 %v437
    %447 = vmatpush.msra.mxu0 %v436
    %448 = vmatpush.msra.mxu0 %v435
    %449 = vmatpush.msra.mxu0 %v434
    %450 = vmatpush.msra.mxu0 %v433
    %451 = vmatpush.msra.mxu0 %v432
    %452 = vmatpush.msra.mxu0 %v431
    %453 = vmatpush.msra.mxu0 %v430
    %454 = vmatpush.msra.mxu0 %v429
    %455 = vmatpush.msra.mxu0 %v428
    %456 = vmatpush.msra.mxu0 %v427
    %457 = vmatpush.msra.mxu0 %v426
    %458 = vmatmul.f32.gmra.mxu0 %v425
    %v459 = vpop.f32.mrf.mxu0
    %v460 = vadd.f32 0.0, %v459
    %461 = vdwg.mxu0
    %462 = vmatpush.msra.mxu0 0.0
    %463 = vmatpush.msra.mxu0 0.0
    %464 = vmatpush.msra.mxu0 0.0
    %465 = vmatpush.msra.mxu0 0.0
    %466 = vmatpush.msra.mxu0 0.0
    %467 = vmatpush.msra.mxu0 0.0
    %468 = vmatpush.msra.mxu0 0.0
    %469 = vmatpush.msra.mxu0 0.0
    %470 = vmatpush.msra.mxu0 0.0
    %471 = vmatpush.msra.mxu0 0.0
    %472 = vmatpush.msra.mxu0 0.0
    %473 = vmatpush.msra.mxu0 0.0
    %474 = vmatpush.msra.mxu0 0.0
    %475 = vmatpush.msra.mxu0 0.0
    %476 = vmatpush.msra.mxu0 0.0
    %477 = vmatpush.msra.mxu0 %v460
    %478 = vmatmul.f32.gmra.mxu0 %v254
    %v479 = vpop.f32.mrf.mxu0
    %v480 = vadd.f32 0.0, %v479
    %481 = vmatmul.f32.gmra.mxu0 %v257
    %v482 = vpop.f32.mrf.mxu0
    %v483 = vadd.f32 0.0, %v482
    %484 = vdwg.mxu0
    %v485 = vmul.f32 %v285, %v480
    %v486 = vmul.f32 %v290, %v483
    %v487 = vld [vmem:[%s13] sm:$0xff]
    %v488 = vld [vmem:[%s13 + $0x8] sm:$0xff]
    %v489 = vld [vmem:[%s13 + $0x10] sm:$0xff]
    %v490 = vld [vmem:[%s13 + $0x18] sm:$0xff]
    %v491 = vld [vmem:[%s13 + $0x20] sm:$0xff]
    %v492 = vld [vmem:[%s13 + $0x28] sm:$0xff]
    %v493 = vld [vmem:[%s13 + $0x30] sm:$0xff]
    %v494 = vld [vmem:[%s13 + $0x38] sm:$0xff]
    %v495 = vld [vmem:[%s13 + $0x40] sm:$0xff]
    %v496 = vld [vmem:[%s13 + $0x48] sm:$0xff]
    %v497 = vld [vmem:[%s13 + $0x50] sm:$0xff]
    %v498 = vld [vmem:[%s13 + $0x58] sm:$0xff]
    %v499 = vld [vmem:[%s13 + $0x60] sm:$0xff]
    %v500 = vld [vmem:[%s13 + $0x68] sm:$0xff]
    %v501 = vld [vmem:[%s13 + $0x70] sm:$0xff]
    %v502 = vld [vmem:[%s13 + $0x78] sm:$0xff]
    %503 = vmatpush.msra.mxu0 %v502
    %504 = vmatpush.msra.mxu0 %v501
    %505 = vmatpush.msra.mxu0 %v500
    %506 = vmatpush.msra.mxu0 %v499
    %507 = vmatpush.msra.mxu0 %v498
    %508 = vmatpush.msra.mxu0 %v497
    %509 = vmatpush.msra.mxu0 %v496
    %510 = vmatpush.msra.mxu0 %v495
    %511 = vmatpush.msra.mxu0 %v494
    %512 = vmatpush.msra.mxu0 %v493
    %513 = vmatpush.msra.mxu0 %v492
    %514 = vmatpush.msra.mxu0 %v491
    %515 = vmatpush.msra.mxu0 %v490
    %516 = vmatpush.msra.mxu0 %v489
    %517 = vmatpush.msra.mxu0 %v488
    %518 = vmatpush.msra.mxu0 %v487
    %519 = vmatmul.f32.gmra.mxu0 %v335
    %v520 = vpop.f32.mrf.mxu0
    %v521 = vadd.f32 0.0, %v520
    %522 = vmatmul.f32.gmra.mxu0 %v336
    %v523 = vpop.f32.mrf.mxu0
    %v524 = vadd.f32 0.0, %v523
    %525 = vdwg.mxu0
    %v526 = vadd.f32 %v485, %v521
    %v527 = vadd.f32 %v486, %v524
    %v528 = vld [vmem:[%s14] sm:$0x1]
    %v530 = vperm.slane %v528, 0
    %v532 = vadd.f32 %v526, %v530
    %v533 = vadd.f32 %v527, %v530
    %v534 = vld [vmem:[#allocation11] sm:$0xff]
    %v535 = vld [vmem:[#allocation11 + $0x8] sm:$0xff]
    %v536 = vld [vmem:[#allocation11 + $0x10] sm:$0xff]
    %v537 = vld [vmem:[#allocation11 + $0x18] sm:$0xff]
    %v538 = vld [vmem:[#allocation11 + $0x20] sm:$0xff]
    %v539 = vld [vmem:[#allocation11 + $0x28] sm:$0xff]
    %v540 = vld [vmem:[#allocation11 + $0x30] sm:$0xff]
    %v541 = vld [vmem:[#allocation11 + $0x38] sm:$0xff]
    %v542 = vld [vmem:[#allocation11 + $0x40] sm:$0xff]
    %v543 = vld [vmem:[#allocation11 + $0x48] sm:$0xff]
    %v544 = vld [vmem:[#allocation11 + $0x50] sm:$0xff]
    %v545 = vld [vmem:[#allocation11 + $0x58] sm:$0xff]
    %v546 = vld [vmem:[#allocation11 + $0x60] sm:$0xff]
    %v547 = vld [vmem:[#allocation11 + $0x68] sm:$0xff]
    %v548 = vld [vmem:[#allocation11 + $0x70] sm:$0xff]
    %v549 = vld [vmem:[#allocation11 + $0x78] sm:$0xff]
    %550 = vmatpush.msra.mxu0 %v549
    %551 = vmatpush.msra.mxu0 %v548
    %552 = vmatpush.msra.mxu0 %v547
    %553 = vmatpush.msra.mxu0 %v546
    %554 = vmatpush.msra.mxu0 %v545
    %555 = vmatpush.msra.mxu0 %v544
    %556 = vmatpush.msra.mxu0 %v543
    %557 = vmatpush.msra.mxu0 %v542
    %558 = vmatpush.msra.mxu0 %v541
    %559 = vmatpush.msra.mxu0 %v540
    %560 = vmatpush.msra.mxu0 %v539
    %561 = vmatpush.msra.mxu0 %v538
    %562 = vmatpush.msra.mxu0 %v537
    %563 = vmatpush.msra.mxu0 %v536
    %564 = vmatpush.msra.mxu0 %v535
    %565 = vmatpush.msra.mxu0 %v534
    %566 = vmatmul.f32.gmra.mxu0 %v335
    %v567 = vpop.f32.mrf.mxu0
    %v568 = vadd.f32 0.0, %v567
    %569 = vmatmul.f32.gmra.mxu0 %v336
    %v570 = vpop.f32.mrf.mxu0
    %v571 = vadd.f32 0.0, %v570
    %572 = vdwg.mxu0
    %573 = vmatpush.msra.mxu0 0.0
    %574 = vmatpush.msra.mxu0 0.0
    %575 = vmatpush.msra.mxu0 0.0
    %576 = vmatpush.msra.mxu0 0.0
    %577 = vmatpush.msra.mxu0 0.0
    %578 = vmatpush.msra.mxu0 0.0
    %579 = vmatpush.msra.mxu0 0.0
    %580 = vmatpush.msra.mxu0 0.0
    %581 = vmatpush.msra.mxu0 0.0
    %582 = vmatpush.msra.mxu0 0.0
    %583 = vmatpush.msra.mxu0 0.0
    %584 = vmatpush.msra.mxu0 0.0
    %585 = vmatpush.msra.mxu0 0.0
    %586 = vmatpush.msra.mxu0 0.0
    %587 = vmatpush.msra.mxu0 %v571
    %588 = vmatpush.msra.mxu0 %v568
    %589 = vmatmul.f32.gmra.mxu0 %v367
    %v590 = vpop.f32.mrf.mxu0
    %v591 = vadd.f32 0.0, %v590
    %592 = vdwg.mxu0
    %v593 = vmul.f32 %v392, %v591
    %v594 = vld [vmem:[#allocation13] sm:$0xff]
    %v595 = vld [vmem:[#allocation13 + $0x8] sm:$0xff]
    %v596 = vld [vmem:[#allocation13 + $0x10] sm:$0xff]
    %v597 = vld [vmem:[#allocation13 + $0x18] sm:$0xff]
    %v598 = vld [vmem:[#allocation13 + $0x20] sm:$0xff]
    %v599 = vld [vmem:[#allocation13 + $0x28] sm:$0xff]
    %v600 = vld [vmem:[#allocation13 + $0x30] sm:$0xff]
    %v601 = vld [vmem:[#allocation13 + $0x38] sm:$0xff]
    %v602 = vld [vmem:[#allocation13 + $0x40] sm:$0xff]
    %v603 = vld [vmem:[#allocation13 + $0x48] sm:$0xff]
    %v604 = vld [vmem:[#allocation13 + $0x50] sm:$0xff]
    %v605 = vld [vmem:[#allocation13 + $0x58] sm:$0xff]
    %v606 = vld [vmem:[#allocation13 + $0x60] sm:$0xff]
    %v607 = vld [vmem:[#allocation13 + $0x68] sm:$0xff]
    %v608 = vld [vmem:[#allocation13 + $0x70] sm:$0xff]
    %v609 = vld [vmem:[#allocation13 + $0x78] sm:$0xff]
    %610 = vmatpush.msra.mxu0 %v609
    %611 = vmatpush.msra.mxu0 %v608
    %612 = vmatpush.msra.mxu0 %v607
    %613 = vmatpush.msra.mxu0 %v606
    %614 = vmatpush.msra.mxu0 %v605
    %615 = vmatpush.msra.mxu0 %v604
    %616 = vmatpush.msra.mxu0 %v603
    %617 = vmatpush.msra.mxu0 %v602
    %618 = vmatpush.msra.mxu0 %v601
    %619 = vmatpush.msra.mxu0 %v600
    %620 = vmatpush.msra.mxu0 %v599
    %621 = vmatpush.msra.mxu0 %v598
    %622 = vmatpush.msra.mxu0 %v597
    %623 = vmatpush.msra.mxu0 %v596
    %624 = vmatpush.msra.mxu0 %v595
    %625 = vmatpush.msra.mxu0 %v594
    %626 = vmatmul.f32.gmra.mxu0 %v425
    %v627 = vpop.f32.mrf.mxu0
    %v628 = vadd.f32 0.0, %v627
    %629 = vdwg.mxu0
    %v630 = vadd.f32 %v593, %v628
    %v631 = vld [vmem:[%s17] sm:$0x1]
    %v633 = vperm.slane %v631, 0
    %v635 = vadd.f32 %v630, %v633
    %v636 = vld [vmem:[%s22] sm:$0xff]
    %v637 = vld [vmem:[%s22 + $0x8] sm:$0xff]
    %v638 = vld [vmem:[%s22 + $0x10] sm:$0xff]
    %v639 = vld [vmem:[%s22 + $0x18] sm:$0xff]
    %v640 = vld [vmem:[%s22 + $0x20] sm:$0xff]
    %v641 = vld [vmem:[%s22 + $0x28] sm:$0xff]
    %v642 = vld [vmem:[%s22 + $0x30] sm:$0xff]
    %v643 = vld [vmem:[%s22 + $0x38] sm:$0xff]
    %v644 = vld [vmem:[%s22 + $0x40] sm:$0xff]
    %v645 = vld [vmem:[%s22 + $0x48] sm:$0xff]
    %v646 = vld [vmem:[%s22 + $0x50] sm:$0xff]
    %v647 = vld [vmem:[%s22 + $0x58] sm:$0xff]
    %v648 = vld [vmem:[%s22 + $0x60] sm:$0xff]
    %v649 = vld [vmem:[%s22 + $0x68] sm:$0xff]
    %v650 = vld [vmem:[%s22 + $0x70] sm:$0xff]
    %v651 = vld [vmem:[%s22 + $0x78] sm:$0xff]
    %v653 = vsel %vm252, %v636, 0
    %v656 = vsel %vm252, %v637, 0
    %v659 = vsel %vm252, %v638, 0
    %v662 = vsel %vm252, %v639, 0
    %v665 = vsel %vm252, %v640, 0
    %v668 = vsel %vm252, %v641, 0
    %v671 = vsel %vm252, %v642, 0
    %v674 = vsel %vm252, %v643, 0
    %v677 = vsel %vm252, %v644, 0
    %v680 = vsel %vm252, %v645, 0
    %v683 = vsel %vm252, %v646, 0
    %v686 = vsel %vm252, %v647, 0
    %v689 = vsel %vm252, %v648, 0
    %v692 = vsel %vm252, %v649, 0
    %v695 = vsel %vm252, %v650, 0
    %v698 = vsel %vm252, %v651, 0
    %700 = vmatpush.msra.mxu0 0.0
    %701 = vmatpush.msra.mxu0 0.0
    %702 = vmatpush.msra.mxu0 0.0
    %703 = vmatpush.msra.mxu0 0.0
    %704 = vmatpush.msra.mxu0 0.0
    %705 = vmatpush.msra.mxu0 0.0
    %706 = vmatpush.msra.mxu0 0.0
    %707 = vmatpush.msra.mxu0 0.0
    %708 = vmatpush.msra.mxu0 0.0
    %709 = vmatpush.msra.mxu0 0.0
    %710 = vmatpush.msra.mxu0 0.0
    %711 = vmatpush.msra.mxu0 0.0
    %712 = vmatpush.msra.mxu0 0.0
    %713 = vmatpush.msra.mxu0 0.0
    %714 = vmatpush.msra.mxu0 0.0
    %715 = vmatpush.msra.mxu0 %v635
    %716 = vmatmul.f32.gmra.mxu0 %v653
    %v717 = vpop.f32.mrf.mxu0
    %v718 = vadd.f32 0.0, %v717
    %719 = vmatmul.f32.gmra.mxu0 %v656
    %v720 = vpop.f32.mrf.mxu0
    %v721 = vadd.f32 0.0, %v720
    %722 = vmatmul.f32.gmra.mxu0 %v659
    %v723 = vpop.f32.mrf.mxu0
    %v724 = vadd.f32 0.0, %v723
    %725 = vmatmul.f32.gmra.mxu0 %v662
    %v726 = vpop.f32.mrf.mxu0
    %v727 = vadd.f32 0.0, %v726
    %728 = vmatmul.f32.gmra.mxu0 %v665
    %v729 = vpop.f32.mrf.mxu0
    %v730 = vadd.f32 0.0, %v729
    %731 = vmatmul.f32.gmra.mxu0 %v668
    %v732 = vpop.f32.mrf.mxu0
    %v733 = vadd.f32 0.0, %v732
    %734 = vmatmul.f32.gmra.mxu0 %v671
    %v735 = vpop.f32.mrf.mxu0
    %v736 = vadd.f32 0.0, %v735
    %737 = vmatmul.f32.gmra.mxu0 %v674
    %v738 = vpop.f32.mrf.mxu0
    %v739 = vadd.f32 0.0, %v738
    %740 = vmatmul.f32.gmra.mxu0 %v677
    %v741 = vpop.f32.mrf.mxu0
    %v742 = vadd.f32 0.0, %v741
    %743 = vmatmul.f32.gmra.mxu0 %v680
    %v744 = vpop.f32.mrf.mxu0
    %v745 = vadd.f32 0.0, %v744
    %746 = vmatmul.f32.gmra.mxu0 %v683
    %v747 = vpop.f32.mrf.mxu0
    %v748 = vadd.f32 0.0, %v747
    %749 = vmatmul.f32.gmra.mxu0 %v686
    %v750 = vpop.f32.mrf.mxu0
    %v751 = vadd.f32 0.0, %v750
    %752 = vmatmul.f32.gmra.mxu0 %v689
    %v753 = vpop.f32.mrf.mxu0
    %v754 = vadd.f32 0.0, %v753
    %755 = vmatmul.f32.gmra.mxu0 %v692
    %v756 = vpop.f32.mrf.mxu0
    %v757 = vadd.f32 0.0, %v756
    %758 = vmatmul.f32.gmra.mxu0 %v695
    %v759 = vpop.f32.mrf.mxu0
    %v760 = vadd.f32 0.0, %v759
    %761 = vmatmul.f32.gmra.mxu0 %v698
    %v762 = vpop.f32.mrf.mxu0
    %v763 = vadd.f32 0.0, %v762
    %764 = vdwg.mxu0
    %v765 = vld [vmem:[%s23] sm:$0xff]
    %v766 = vld [vmem:[%s23 + $0x8] sm:$0xff]
    %v767 = vld [vmem:[%s23 + $0x10] sm:$0xff]
    %v768 = vld [vmem:[%s23 + $0x18] sm:$0xff]
    %v769 = vld [vmem:[%s23 + $0x20] sm:$0xff]
    %v770 = vld [vmem:[%s23 + $0x28] sm:$0xff]
    %v771 = vld [vmem:[%s23 + $0x30] sm:$0xff]
    %v772 = vld [vmem:[%s23 + $0x38] sm:$0xff]
    %v773 = vld [vmem:[%s23 + $0x40] sm:$0xff]
    %v774 = vld [vmem:[%s23 + $0x48] sm:$0xff]
    %v775 = vld [vmem:[%s23 + $0x50] sm:$0xff]
    %v776 = vld [vmem:[%s23 + $0x58] sm:$0xff]
    %v777 = vld [vmem:[%s23 + $0x60] sm:$0xff]
    %v778 = vld [vmem:[%s23 + $0x68] sm:$0xff]
    %v779 = vld [vmem:[%s23 + $0x70] sm:$0xff]
    %v780 = vld [vmem:[%s23 + $0x78] sm:$0xff]
    %v782 = vsel %vm365, %v765, 0
    %v785 = vsel %vm365, %v766, 0
    %v788 = vsel %vm365, %v767, 0
    %v791 = vsel %vm365, %v768, 0
    %v794 = vsel %vm365, %v769, 0
    %v797 = vsel %vm365, %v770, 0
    %v800 = vsel %vm365, %v771, 0
    %v803 = vsel %vm365, %v772, 0
    %v806 = vsel %vm365, %v773, 0
    %v809 = vsel %vm365, %v774, 0
    %v812 = vsel %vm365, %v775, 0
    %v815 = vsel %vm365, %v776, 0
    %v818 = vsel %vm365, %v777, 0
    %v821 = vsel %vm365, %v778, 0
    %v824 = vsel %vm365, %v779, 0
    %v827 = vsel %vm365, %v780, 0
    %829 = vmatpush.msra.mxu0 0.0
    %830 = vmatpush.msra.mxu0 0.0
    %831 = vmatpush.msra.mxu0 0.0
    %832 = vmatpush.msra.mxu0 0.0
    %833 = vmatpush.msra.mxu0 0.0
    %834 = vmatpush.msra.mxu0 0.0
    %835 = vmatpush.msra.mxu0 0.0
    %836 = vmatpush.msra.mxu0 0.0
    %837 = vmatpush.msra.mxu0 0.0
    %838 = vmatpush.msra.mxu0 0.0
    %839 = vmatpush.msra.mxu0 0.0
    %840 = vmatpush.msra.mxu0 0.0
    %841 = vmatpush.msra.mxu0 0.0
    %842 = vmatpush.msra.mxu0 0.0
    %843 = vmatpush.msra.mxu0 %v533
    %844 = vmatpush.msra.mxu0 %v532
    %845 = vmatmul.f32.gmra.mxu0 %v782
    %v846 = vpop.f32.mrf.mxu0
    %v847 = vadd.f32 0.0, %v846
    %848 = vmatmul.f32.gmra.mxu0 %v785
    %v849 = vpop.f32.mrf.mxu0
    %v850 = vadd.f32 0.0, %v849
    %851 = vmatmul.f32.gmra.mxu0 %v788
    %v852 = vpop.f32.mrf.mxu0
    %v853 = vadd.f32 0.0, %v852
    %854 = vmatmul.f32.gmra.mxu0 %v791
    %v855 = vpop.f32.mrf.mxu0
    %v856 = vadd.f32 0.0, %v855
    %857 = vmatmul.f32.gmra.mxu0 %v794
    %v858 = vpop.f32.mrf.mxu0
    %v859 = vadd.f32 0.0, %v858
    %860 = vmatmul.f32.gmra.mxu0 %v797
    %v861 = vpop.f32.mrf.mxu0
    %v862 = vadd.f32 0.0, %v861
    %863 = vmatmul.f32.gmra.mxu0 %v800
    %v864 = vpop.f32.mrf.mxu0
    %v865 = vadd.f32 0.0, %v864
    %866 = vmatmul.f32.gmra.mxu0 %v803
    %v867 = vpop.f32.mrf.mxu0
    %v868 = vadd.f32 0.0, %v867
    %869 = vmatmul.f32.gmra.mxu0 %v806
    %v870 = vpop.f32.mrf.mxu0
    %v871 = vadd.f32 0.0, %v870
    %872 = vmatmul.f32.gmra.mxu0 %v809
    %v873 = vpop.f32.mrf.mxu0
    %v874 = vadd.f32 0.0, %v873
    %875 = vmatmul.f32.gmra.mxu0 %v812
    %v876 = vpop.f32.mrf.mxu0
    %v877 = vadd.f32 0.0, %v876
    %878 = vmatmul.f32.gmra.mxu0 %v815
    %v879 = vpop.f32.mrf.mxu0
    %v880 = vadd.f32 0.0, %v879
    %881 = vmatmul.f32.gmra.mxu0 %v818
    %v882 = vpop.f32.mrf.mxu0
    %v883 = vadd.f32 0.0, %v882
    %884 = vmatmul.f32.gmra.mxu0 %v821
    %v885 = vpop.f32.mrf.mxu0
    %v886 = vadd.f32 0.0, %v885
    %887 = vmatmul.f32.gmra.mxu0 %v824
    %v888 = vpop.f32.mrf.mxu0
    %v889 = vadd.f32 0.0, %v888
    %890 = vmatmul.f32.gmra.mxu0 %v827
    %v891 = vpop.f32.mrf.mxu0
    %v892 = vadd.f32 0.0, %v891
    %893 = vdwg.mxu0
    %v894 = vld [vmem:[#allocation14] sm:$0xff]
    %v895 = vld [vmem:[#allocation14 + $0x8] sm:$0xff]
    %v896 = vld [vmem:[#allocation14 + $0x10] sm:$0xff]
    %v897 = vld [vmem:[#allocation14 + $0x18] sm:$0xff]
    %v898 = vld [vmem:[#allocation14 + $0x20] sm:$0xff]
    %v899 = vld [vmem:[#allocation14 + $0x28] sm:$0xff]
    %v900 = vld [vmem:[#allocation14 + $0x30] sm:$0xff]
    %v901 = vld [vmem:[#allocation14 + $0x38] sm:$0xff]
    %v902 = vld [vmem:[#allocation14 + $0x40] sm:$0xff]
    %v903 = vld [vmem:[#allocation14 + $0x48] sm:$0xff]
    %v904 = vld [vmem:[#allocation14 + $0x50] sm:$0xff]
    %v905 = vld [vmem:[#allocation14 + $0x58] sm:$0xff]
    %v906 = vld [vmem:[#allocation14 + $0x60] sm:$0xff]
    %v907 = vld [vmem:[#allocation14 + $0x68] sm:$0xff]
    %v908 = vld [vmem:[#allocation14 + $0x70] sm:$0xff]
    %v909 = vld [vmem:[#allocation14 + $0x78] sm:$0xff]
    %v910 = vld [vmem:[%s19] sm:$0x1]
    %v912 = vperm.slane %v910, 0
    %914 = vmatpush.msra.mxu0 %v909
    %915 = vmatpush.msra.mxu0 %v908
    %916 = vmatpush.msra.mxu0 %v907
    %917 = vmatpush.msra.mxu0 %v906
    %918 = vmatpush.msra.mxu0 %v905
    %919 = vmatpush.msra.mxu0 %v904
    %920 = vmatpush.msra.mxu0 %v903
    %921 = vmatpush.msra.mxu0 %v902
    %922 = vmatpush.msra.mxu0 %v901
    %923 = vmatpush.msra.mxu0 %v900
    %924 = vmatpush.msra.mxu0 %v899
    %925 = vmatpush.msra.mxu0 %v898
    %926 = vmatpush.msra.mxu0 %v897
    %927 = vmatpush.msra.mxu0 %v896
    %928 = vmatpush.msra.mxu0 %v895
    %929 = vmatpush.msra.mxu0 %v894
    %930 = vmatmul.f32.gmra.mxu0 %v718
    %v931 = vpop.f32.mrf.mxu0
    %v932 = vadd.f32 %v912, %v931
    %933 = vmatmul.f32.gmra.mxu0 %v721
    %v934 = vpop.f32.mrf.mxu0
    %v935 = vadd.f32 %v912, %v934
    %936 = vmatmul.f32.gmra.mxu0 %v724
    %v937 = vpop.f32.mrf.mxu0
    %v938 = vadd.f32 %v912, %v937
    %939 = vmatmul.f32.gmra.mxu0 %v727
    %v940 = vpop.f32.mrf.mxu0
    %v941 = vadd.f32 %v912, %v940
    %942 = vmatmul.f32.gmra.mxu0 %v730
    %v943 = vpop.f32.mrf.mxu0
    %v944 = vadd.f32 %v912, %v943
    %945 = vmatmul.f32.gmra.mxu0 %v733
    %v946 = vpop.f32.mrf.mxu0
    %v947 = vadd.f32 %v912, %v946
    %948 = vmatmul.f32.gmra.mxu0 %v736
    %v949 = vpop.f32.mrf.mxu0
    %v950 = vadd.f32 %v912, %v949
    %951 = vmatmul.f32.gmra.mxu0 %v739
    %v952 = vpop.f32.mrf.mxu0
    %v953 = vadd.f32 %v912, %v952
    %954 = vmatmul.f32.gmra.mxu0 %v742
    %v955 = vpop.f32.mrf.mxu0
    %v956 = vadd.f32 %v912, %v955
    %957 = vmatmul.f32.gmra.mxu0 %v745
    %v958 = vpop.f32.mrf.mxu0
    %v959 = vadd.f32 %v912, %v958
    %960 = vmatmul.f32.gmra.mxu0 %v748
    %v961 = vpop.f32.mrf.mxu0
    %v962 = vadd.f32 %v912, %v961
    %963 = vmatmul.f32.gmra.mxu0 %v751
    %v964 = vpop.f32.mrf.mxu0
    %v965 = vadd.f32 %v912, %v964
    %966 = vmatmul.f32.gmra.mxu0 %v754
    %v967 = vpop.f32.mrf.mxu0
    %v968 = vadd.f32 %v912, %v967
    %969 = vmatmul.f32.gmra.mxu0 %v757
    %v970 = vpop.f32.mrf.mxu0
    %v971 = vadd.f32 %v912, %v970
    %972 = vmatmul.f32.gmra.mxu0 %v760
    %v973 = vpop.f32.mrf.mxu0
    %v974 = vadd.f32 %v912, %v973
    %975 = vmatmul.f32.gmra.mxu0 %v763
    %v976 = vpop.f32.mrf.mxu0
    %v977 = vadd.f32 %v912, %v976
    %978 = vdwg.mxu0
    %v979 = vld [vmem:[#allocation16] sm:$0xff]
    %v980 = vld [vmem:[#allocation16 + $0x8] sm:$0xff]
    %v981 = vld [vmem:[#allocation16 + $0x10] sm:$0xff]
    %v982 = vld [vmem:[#allocation16 + $0x18] sm:$0xff]
    %v983 = vld [vmem:[#allocation16 + $0x20] sm:$0xff]
    %v984 = vld [vmem:[#allocation16 + $0x28] sm:$0xff]
    %v985 = vld [vmem:[#allocation16 + $0x30] sm:$0xff]
    %v986 = vld [vmem:[#allocation16 + $0x38] sm:$0xff]
    %v987 = vld [vmem:[#allocation16 + $0x40] sm:$0xff]
    %v988 = vld [vmem:[#allocation16 + $0x48] sm:$0xff]
    %v989 = vld [vmem:[#allocation16 + $0x50] sm:$0xff]
    %v990 = vld [vmem:[#allocation16 + $0x58] sm:$0xff]
    %v991 = vld [vmem:[#allocation16 + $0x60] sm:$0xff]
    %v992 = vld [vmem:[#allocation16 + $0x68] sm:$0xff]
    %v993 = vld [vmem:[#allocation16 + $0x70] sm:$0xff]
    %v994 = vld [vmem:[#allocation16 + $0x78] sm:$0xff]
    %v995 = vld [vmem:[%s21] sm:$0x1]
    %v997 = vperm.slane %v995, 0
    %999 = vmatpush.msra.mxu0 %v994
    %1000 = vmatpush.msra.mxu0 %v993
    %1001 = vmatpush.msra.mxu0 %v992
    %1002 = vmatpush.msra.mxu0 %v991
    %1003 = vmatpush.msra.mxu0 %v990
    %1004 = vmatpush.msra.mxu0 %v989
    %1005 = vmatpush.msra.mxu0 %v988
    %1006 = vmatpush.msra.mxu0 %v987
    %1007 = vmatpush.msra.mxu0 %v986
    %1008 = vmatpush.msra.mxu0 %v985
    %1009 = vmatpush.msra.mxu0 %v984
    %1010 = vmatpush.msra.mxu0 %v983
    %1011 = vmatpush.msra.mxu0 %v982
    %1012 = vmatpush.msra.mxu0 %v981
    %1013 = vmatpush.msra.mxu0 %v980
    %1014 = vmatpush.msra.mxu0 %v979
    %1015 = vmatmul.f32.gmra.mxu0 %v847
    %v1016 = vpop.f32.mrf.mxu0
    %v1017 = vadd.f32 %v997, %v1016
    %1018 = vmatmul.f32.gmra.mxu0 %v850
    %v1019 = vpop.f32.mrf.mxu0
    %v1020 = vadd.f32 %v997, %v1019
    %1021 = vmatmul.f32.gmra.mxu0 %v853
    %v1022 = vpop.f32.mrf.mxu0
    %v1023 = vadd.f32 %v997, %v1022
    %1024 = vmatmul.f32.gmra.mxu0 %v856
    %v1025 = vpop.f32.mrf.mxu0
    %v1026 = vadd.f32 %v997, %v1025
    %1027 = vmatmul.f32.gmra.mxu0 %v859
    %v1028 = vpop.f32.mrf.mxu0
    %v1029 = vadd.f32 %v997, %v1028
    %1030 = vmatmul.f32.gmra.mxu0 %v862
    %v1031 = vpop.f32.mrf.mxu0
    %v1032 = vadd.f32 %v997, %v1031
    %1033 = vmatmul.f32.gmra.mxu0 %v865
    %v1034 = vpop.f32.mrf.mxu0
    %v1035 = vadd.f32 %v997, %v1034
    %1036 = vmatmul.f32.gmra.mxu0 %v868
    %v1037 = vpop.f32.mrf.mxu0
    %v1038 = vadd.f32 %v997, %v1037
    %1039 = vmatmul.f32.gmra.mxu0 %v871
    %v1040 = vpop.f32.mrf.mxu0
    %v1041 = vadd.f32 %v997, %v1040
    %1042 = vmatmul.f32.gmra.mxu0 %v874
    %v1043 = vpop.f32.mrf.mxu0
    %v1044 = vadd.f32 %v997, %v1043
    %1045 = vmatmul.f32.gmra.mxu0 %v877
    %v1046 = vpop.f32.mrf.mxu0
    %v1047 = vadd.f32 %v997, %v1046
    %1048 = vmatmul.f32.gmra.mxu0 %v880
    %v1049 = vpop.f32.mrf.mxu0
    %v1050 = vadd.f32 %v997, %v1049
    %1051 = vmatmul.f32.gmra.mxu0 %v883
    %v1052 = vpop.f32.mrf.mxu0
    %v1053 = vadd.f32 %v997, %v1052
    %1054 = vmatmul.f32.gmra.mxu0 %v886
    %v1055 = vpop.f32.mrf.mxu0
    %v1056 = vadd.f32 %v997, %v1055
    %1057 = vmatmul.f32.gmra.mxu0 %v889
    %v1058 = vpop.f32.mrf.mxu0
    %v1059 = vadd.f32 %v997, %v1058
    %1060 = vmatmul.f32.gmra.mxu0 %v892
    %v1061 = vpop.f32.mrf.mxu0
    %v1062 = vadd.f32 %v997, %v1061
    %1063 = vdwg.mxu0
    %v1064 = vmul.f32 %v932, %v1017
    %v1065 = vmul.f32 %v935, %v1020
    %v1066 = vmul.f32 %v938, %v1023
    %v1067 = vmul.f32 %v941, %v1026
    %v1068 = vmul.f32 %v944, %v1029
    %v1069 = vmul.f32 %v947, %v1032
    %v1070 = vmul.f32 %v950, %v1035
    %v1071 = vmul.f32 %v953, %v1038
    %v1072 = vmul.f32 %v956, %v1041
    %v1073 = vmul.f32 %v959, %v1044
    %v1074 = vmul.f32 %v962, %v1047
    %v1075 = vmul.f32 %v965, %v1050
    %v1076 = vmul.f32 %v968, %v1053
    %v1077 = vmul.f32 %v971, %v1056
    %v1078 = vmul.f32 %v974, %v1059
    %v1079 = vmul.f32 %v977, %v1062
    %1080 = vmatpush.xpose.msra.mxu0 %v1079
    %1081 = vmatpush.xpose.msra.mxu0 %v1078
    %1082 = vmatpush.xpose.msra.mxu0 %v1077
    %1083 = vmatpush.xpose.msra.mxu0 %v1076
    %1084 = vmatpush.xpose.msra.mxu0 %v1075
    %1085 = vmatpush.xpose.msra.mxu0 %v1074
    %1086 = vmatpush.xpose.msra.mxu0 %v1073
    %1087 = vmatpush.xpose.msra.mxu0 %v1072
    %1088 = vmatpush.xpose.msra.mxu0 %v1071
    %1089 = vmatpush.xpose.msra.mxu0 %v1070
    %1090 = vmatpush.xpose.msra.mxu0 %v1069
    %1091 = vmatpush.xpose.msra.mxu0 %v1068
    %1092 = vmatpush.xpose.msra.mxu0 %v1067
    %1093 = vmatpush.xpose.msra.mxu0 %v1066
    %1094 = vmatpush.xpose.msra.mxu0 %v1065
    %1095 = vmatpush.xpose.msra.mxu0 %v1064
    %1096 = vmatmul.f32.gmra.mxu0 1.0
    %v1097 = vpop.f32.mrf.mxu0
    %v1098 = vadd.f32 0.0, %v1097
    %1099 = vdwg.mxu0
    %1100 = vst [vmem:[#allocation17] sm:$0x1] %v1098
    // Predicated region
    $region134: #{tpu_custom_call.1} parent=1 // pred_check
      _
    $region135: #{tpu_custom_call.1} parent=1 // pred_check_branch
      %1102 = sbr.rel (0) target = $region137
    $region136: #{tpu_custom_call.1} parent=1 // pred_region
      %1104 = vsyncadd [#allocation4], 0
      %s1106 = sshll.u32 [#allocation17], 4
      %s1107 = int_to_ptr.vmem [resolvable:$true] %s1106
      %s1108 = sshll.u32 %s24, 4
      %s1109 = int_to_ptr.hbm [resolvable:$true] %s1108
      %1111 = dma.vmem_to_hbm [thread:$0]  %s1107, 16, %s1109, [#allocation4]
    $region137: #{tpu_custom_call.1} parent=1 // pred_fallthru
      _
    // Predicated region
    $region138: #{tpu_custom_call.1} parent=1 // pred_check
      _
    $region139: #{tpu_custom_call.1} parent=1 // pred_check_branch
      %1113 = sbr.rel (0) target = $region141
    $region140: #{tpu_custom_call.1} parent=1 // pred_region
      %1115 = dma.done [#allocation4], 16
    $region141: #{tpu_custom_call.1} parent=1 // pred_fallthru
      _
    %1116 = vsyncpa [#allocation3], 1
    %1117 = vsyncpa [#allocation6], 1
    %1118 = vsyncpa [#allocation9], 1
    %1119 = vsyncpa [#allocation12], 1
    %1120 = vsyncpa [#allocation15], 1
    %1121 = vsyncpa [#allocation4], 1

</llo_original>
